<compile_context>
chip_gen: v7x
topology: tpu7x:2x2x1
jax: 0.10.0
libtpu: 0.0.40
codegen_flags: <defaults>
</compile_context>

<pallas_src>
import functools

import jax
import jax.numpy as jnp
import numpy as np
from jax.experimental import pallas as pl
from jax.experimental.pallas import tpu as pltpu


def _round_up(x, m):
    return (x + m - 1) // m * m


def _fused_deconv_in_relu_kernel(x_ref, w_ref, gb_ref, mask_ref, o_ref, *,
                                 c_out, wp, ppad, count):
    # x_ref:    (1, C_in, Lpad)     zero-padded input, spatial flattened on lanes
    # w_ref:    (4, 4*c_out, C_in)  per-tap sub-pixel weights (tap index = 2a+b)
    # gb_ref:   (c_out, 2)          [:,0]=gamma, [:,1]=beta (f32)
    # mask_ref: (4, Ppad)           per-parity stats validity mask, f32 {0,1}
    # o_ref:    (1, 4*c_out, Ppad)

    # --- transposed conv: 4 accumulating MXU matmuls on lane-shifted views of the
    # padded input. The 2x2 taps are constant lane offsets {0, 1, Wp, Wp+1} into
    # the flattened slab, so the "gather" is in-VMEM window loads (no HBM patch
    # tensor). Accumulation is f32 regardless of the operand dtype.
    z = None
    for a in range(2):
        for b in range(2):
            t = 2 * a + b
            xt = x_ref[0, :, pl.ds(a * wp + b, ppad)]               # (C_in, Ppad)
            zt = jnp.dot(w_ref[t], xt, preferred_element_type=jnp.float32)
            z = zt if z is None else z + zt                         # (4*c_out, Ppad) f32

    mask = mask_ref[...]                                            # (4, Ppad)
    inv_count = 1.0 / count

    # InstanceNorm statistics, two-pass (accuracy), masked to valid coarse
    # positions; per-parity slices are sublane-tile aligned (c_out % 8 == 0).
    s = jnp.zeros((c_out, 1), jnp.float32)
    for q in range(4):
        s = s + jnp.sum(z[q * c_out:(q + 1) * c_out, :] * mask[q:q + 1, :],
                        axis=1, keepdims=True)
    mean = s * inv_count                                            # (c_out, 1)

    ss = jnp.zeros((c_out, 1), jnp.float32)
    for q in range(4):
        d = (z[q * c_out:(q + 1) * c_out, :] - mean) * mask[q:q + 1, :]
        ss = ss + jnp.sum(d * d, axis=1, keepdims=True)
    var = ss * inv_count

    scale = gb_ref[:, 0:1] * jax.lax.rsqrt(var + 1e-5)              # gamma / std
    shift = gb_ref[:, 1:2] - mean * scale                           # beta - mean*scale

    # Affine + ReLU on the UNMASKED z: invalid coarse positions are exactly the
    # ones sliced away by the wrapper's pixel shuffle (keep both sides in sync).
    # Stores are lane-dense (Ppad % 128 == 0) and sublane-tile aligned.
    for q in range(4):
        yq = z[q * c_out:(q + 1) * c_out, :] * scale + shift
        o_ref[0, q * c_out:(q + 1) * c_out, :] = jnp.maximum(yq, 0.0).astype(o_ref.dtype)


def deconv_block_forward(x, weight_t, bias, gamma, beta, k=4, s=2, p=1,
                         matmul_dtype=jnp.bfloat16, out_dtype=jnp.bfloat16):
    """DeconvBlock forward (ConvTranspose2d(4,2,1) + InstanceNorm2d(affine) + ReLU).

    x: [N, C_in, H, W] NCHW.  weight_t: ConvTranspose2d weight [C_in, C_out, k, k].
    `bias` is accepted for API parity but cancels exactly under the InstanceNorm
    mean subtraction (do not re-add it downstream).
    """
    assert (k, s, p) == (4, 2, 1), "sub-pixel lowering specialised to k=4,s=2,p=1"
    del bias  # per-channel conv bias is removed exactly by the IN mean subtraction
    N, C_in, H, W = x.shape
    C_out = weight_t.shape[1]
    c_align = 16 if jnp.dtype(out_dtype).itemsize < 4 else 8
    C_out_pad = _round_up(C_out, c_align)   # tile-aligned per-parity slices/stores
    Hp, Wp = H + 2, W + 2                   # zero-padded input spatial dims
    Hc = H + 1                              # coarse (pre-pixel-shuffle) rows
    P = Hc * Wp                             # coarse positions (row width Wp; last col invalid)
    Ppad = _round_up(P, 128)                # lane-dense matmul / unmasked stores
    Lpad = _round_up(Ppad + Wp + 2, 128)    # room for the largest tap shift (Wp+1)

    # --- input: zero-pad border, flatten spatial onto the lane axis, pad lanes.
    x_pad = jnp.pad(x.astype(matmul_dtype), ((0, 0), (0, 0), (1, 1), (1, 1)))
    x_flat = jnp.pad(x_pad.reshape(N, C_in, Hp * Wp),
                     ((0, 0), (0, 0), (0, Lpad - Hp * Wp)))           # (N, C_in, Lpad)

    # --- weights: (C_in, C_out, 4, 4) -> (4 taps, 4*C_out_pad, C_in)
    # w_taps[2a+b, (2r+c)*C_out_pad + co, ci] = weight_t[ci, co, 3-r-2a, 3-c-2b]
    wf = weight_t[:, :, ::-1, ::-1].reshape(C_in, C_out, 2, 2, 2, 2)  # (ci,co,a,r,b,c)
    w_t = jnp.transpose(wf, (2, 4, 3, 5, 1, 0)).reshape(4, 2, 2, C_out, C_in)
    w_taps = jnp.zeros((4, 2, 2, C_out_pad, C_in), matmul_dtype)
    w_taps = w_taps.at[:, :, :, :C_out, :].set(w_t.astype(matmul_dtype))
    w_taps = w_taps.reshape(4, 4 * C_out_pad, C_in)

    gb = jnp.zeros((C_out_pad, 2), jnp.float32)
    gb = gb.at[:C_out, 0].set(gamma.astype(jnp.float32))
    gb = gb.at[:C_out, 1].set(beta.astype(jnp.float32))

    # --- per-parity validity mask on the coarse grid (constant, f32 {0,1}).
    u = np.arange(Hc)[:, None]
    v = np.arange(Wp)[None, :]
    mask_np = np.zeros((4, Ppad), np.float32)
    for r in range(2):
        for c in range(2):
            m = (u >= r) & (u < r + H) & (v >= c) & (v < c + W)
            mask_np[2 * r + c, :P] = m.astype(np.float32).reshape(-1)
    mask = jnp.asarray(mask_np)

    kernel = functools.partial(_fused_deconv_in_relu_kernel,
                               c_out=C_out_pad, wp=Wp, ppad=Ppad,
                               count=float(4 * H * W))

    in_b = jnp.dtype(matmul_dtype).itemsize
    out_b = jnp.dtype(out_dtype).itemsize
    block_bytes = (2 * C_in * Lpad * in_b                    # x block (double-buffered)
                   + 2 * 4 * C_out_pad * Ppad * out_b        # out block (double-buffered)
                   + 2 * 4 * 4 * C_out_pad * C_in * in_b     # weights
                   + 2 * 4 * Ppad * 4 + 2 * C_out_pad * 8    # mask, gamma/beta
                   + 2 * 4 * C_out_pad * Ppad * 4)           # f32 z + epilogue temporaries
    vmem_limit = int(min(max(2 * block_bytes, 32 * 2**20), 96 * 2**20))

    # TODO(synk): for very large C_in/C_out/spatial (v7x: 64 MiB VMEM), add a grid
    # axis over Ppad ("arbitrary") with scratch-accumulated (sum, sumsq) and a
    # finalize/normalize sweep; also single-buffer the grid-constant operands
    # (pipeline_mode=pl.Buffered(1)) and, for N=1 on v7x, parallelize over that
    # P-tile axis instead of the batch axis.
    z = pl.pallas_call(
        kernel,
        out_shape=jax.ShapeDtypeStruct((N, 4 * C_out_pad, Ppad), out_dtype),
        grid_spec=pltpu.PrefetchScalarGridSpec(
            num_scalar_prefetch=0,
            grid=(N,),
            in_specs=[
                pl.BlockSpec((1, C_in, Lpad), lambda n: (n, 0, 0)),
                pl.BlockSpec((4, 4 * C_out_pad, C_in), lambda n: (0, 0, 0)),
                pl.BlockSpec((C_out_pad, 2), lambda n: (0, 0)),
                pl.BlockSpec((4, Ppad), lambda n: (0, 0)),
            ],
            out_specs=pl.BlockSpec((1, 4 * C_out_pad, Ppad), lambda n: (n, 0, 0)),
        ),
        compiler_params=pltpu.CompilerParams(
            dimension_semantics=("parallel",),
            vmem_limit_bytes=vmem_limit),
    )(x_flat, w_taps, gb, mask)

    # --- pixel shuffle (depth-to-space with parity-dependent coarse offsets).
    # This slice pattern is what makes the kernel's unmasked affine/store valid:
    # it discards exactly the coarse positions excluded from the statistics.
    # TODO(synk): consumers that accept the parity-separated (N,2,2,C,Hc,Wp)
    # layout can skip this pass and its HBM round trip entirely.
    z = z[:, :, :P].reshape(N, 2, 2, C_out_pad, Hc, Wp)
    rows = []
    for r in range(2):
        cols = [z[:, r, c, :C_out, r:r + H, c:c + W] for c in range(2)]
        rows.append(jnp.stack(cols, axis=-1))                        # (N, C_out, H, W, 2)
    out = jnp.stack(rows, axis=3)                                    # (N, C_out, H, 2, W, 2)
    return out.reshape(N, C_out, 2 * H, 2 * W)                       # NCHW


def reference_forward(x, weight_t, bias, gamma, beta, k=4, s=2, p=1):
    """Pure-JAX reference (lax.conv_general_dilated) for correctness check."""
    w_conv = jnp.transpose(weight_t, (1, 0, 2, 3))[:, :, ::-1, ::-1]
    pad = k - 1 - p
    y = jax.lax.conv_general_dilated(
        x, w_conv, window_strides=(1, 1),
        padding=[(pad, pad), (pad, pad)],
        lhs_dilation=(s, s),
        dimension_numbers=('NCHW', 'OIHW', 'NCHW'))
    y = y + bias.reshape(1, -1, 1, 1)
    mean = jnp.mean(y, axis=(2, 3), keepdims=True)
    var = jnp.mean((y - mean) ** 2, axis=(2, 3), keepdims=True)
    y = (y - mean) * jax.lax.rsqrt(var + 1e-5)
    y = y * gamma.reshape(1, -1, 1, 1) + beta.reshape(1, -1, 1, 1)
    return jnp.maximum(y, 0.0)


if __name__ == "__main__":
    key = jax.random.PRNGKey(0)
    k1, k2, k3, k4, k5 = jax.random.split(key, 5)

    N, C_in, H, W = 2, 4, 16, 16
    C_out, K, S, PAD = 8, 4, 2, 1

    x = jax.random.normal(k1, (N, C_in, H, W), jnp.float32)
    # ConvTranspose2d weight shape: [in_dim, out_dim, k, k]
    weight_t = 0.1 * jax.random.normal(k2, (C_in, C_out, K, K), jnp.float32)
    bias = 0.1 * jax.random.normal(k3, (C_out,), jnp.float32)
    # InstanceNorm2d affine params
    gamma = 1.0 + 0.1 * jax.random.normal(k4, (C_out,), jnp.float32)
    beta = 0.1 * jax.random.normal(k5, (C_out,), jnp.float32)

    ref = reference_forward(x, weight_t, bias, gamma, beta, k=K, s=S, p=PAD)

    # Strict-accuracy path: f32 matmul inputs, f32 output.
    out_f32 = deconv_block_forward(x, weight_t, bias, gamma, beta, k=K, s=S, p=PAD,
                                   matmul_dtype=jnp.float32, out_dtype=jnp.float32)
    out_f32 = jax.block_until_ready(out_f32)
    assert out_f32.shape == (N, C_out, 2 * H, 2 * W), out_f32.shape
    np.testing.assert_allclose(np.asarray(out_f32), np.asarray(ref), atol=2e-4, rtol=2e-4)

    # Default (performance) path: bf16 matmul inputs + bf16 output, f32 stats.
    out_bf16 = deconv_block_forward(x, weight_t, bias, gamma, beta, k=K, s=S, p=PAD)
    out_bf16 = jax.block_until_ready(out_bf16)
    assert out_bf16.shape == (N, C_out, 2 * H, 2 * W), out_bf16.shape
    np.testing.assert_allclose(np.asarray(out_bf16).astype(np.float32), np.asarray(ref),
                               atol=1e-1, rtol=1e-1)

    print("KERNEL_OK")
</pallas_src>

<mosaic_0001>
module attributes {stable_mosaic.version = 11 : i64} {
  func.func @_fused_deconv_in_relu_kernel(%arg0: i32, %arg1: memref<1x4x512xf32, #tpu.memory_space<vmem>>, %arg2: memref<4x32x4xf32, #tpu.memory_space<vmem>>, %arg3: memref<8x2xf32, #tpu.memory_space<vmem>>, %arg4: memref<4x384xf32, #tpu.memory_space<vmem>>, %arg5: memref<1x32x384xf32, #tpu.memory_space<vmem>>) attributes {dimension_semantics = [#tpu.dimension_semantics<parallel>], iteration_bounds = array<i64: 2>, scalar_prefetch = 0 : i64, scratch_operands = 0 : i64, tpu.core_type = #tpu.core_type<tc>, window_params = [{transform_indices = @transform_0, window_bounds = array<i64: 1, 4, 512>}, {pipeline_mode = #tpu.pipeline_mode<synchronous>, transform_indices = @transform_1, window_bounds = array<i64: 4, 32, 4>}, {pipeline_mode = #tpu.pipeline_mode<synchronous>, transform_indices = @transform_2, window_bounds = array<i64: 8, 2>}, {pipeline_mode = #tpu.pipeline_mode<synchronous>, transform_indices = @transform_3, window_bounds = array<i64: 4, 384>}, {transform_indices = @transform_4, window_bounds = array<i64: 1, 32, 384>}]} {
    %c0 = arith.constant 0 : index
    %c0_0 = arith.constant 0 : index
    %c0_1 = arith.constant 0 : index
    %0 = vector.load %arg1[%c0, %c0_0, %c0_1] : memref<1x4x512xf32, #tpu.memory_space<vmem>>, vector<1x4x384xf32>
    %1 = vector.shape_cast %0 : vector<1x4x384xf32> to vector<4x384xf32>
    %c0_2 = arith.constant 0 : index
    %c0_3 = arith.constant 0 : index
    %c0_4 = arith.constant 0 : index
    %2 = vector.load %arg2[%c0_2, %c0_3, %c0_4] : memref<4x32x4xf32, #tpu.memory_space<vmem>>, vector<1x32x4xf32>
    %3 = vector.shape_cast %2 : vector<1x32x4xf32> to vector<32x4xf32>
    %cst = arith.constant dense<0.000000e+00> : vector<32x384xf32>
    %4 = tpu.matmul %3, %1, %cst {dimension_numbers = #tpu.dot_dimension_numbers<[1], [0], [0], [1], [0, 0, 1, 1], [], []>} : vector<32x4xf32>, vector<4x384xf32>, vector<32x384xf32> -> vector<32x384xf32>
    %c0_5 = arith.constant 0 : index
    %c0_6 = arith.constant 0 : index
    %c1 = arith.constant 1 : index
    %5 = vector.load %arg1[%c0_5, %c0_6, %c1] : memref<1x4x512xf32, #tpu.memory_space<vmem>>, vector<1x4x384xf32>
    %6 = vector.shape_cast %5 : vector<1x4x384xf32> to vector<4x384xf32>
    %c1_7 = arith.constant 1 : index
    %c0_8 = arith.constant 0 : index
    %c0_9 = arith.constant 0 : index
    %7 = vector.load %arg2[%c1_7, %c0_8, %c0_9] : memref<4x32x4xf32, #tpu.memory_space<vmem>>, vector<1x32x4xf32>
    %8 = vector.shape_cast %7 : vector<1x32x4xf32> to vector<32x4xf32>
    %cst_10 = arith.constant dense<0.000000e+00> : vector<32x384xf32>
    %9 = tpu.matmul %8, %6, %cst_10 {dimension_numbers = #tpu.dot_dimension_numbers<[1], [0], [0], [1], [0, 0, 1, 1], [], []>} : vector<32x4xf32>, vector<4x384xf32>, vector<32x384xf32> -> vector<32x384xf32>
    %10 = arith.addf %4, %9 : vector<32x384xf32>
    %c0_11 = arith.constant 0 : index
    %c0_12 = arith.constant 0 : index
    %c18 = arith.constant 18 : index
    %11 = vector.load %arg1[%c0_11, %c0_12, %c18] : memref<1x4x512xf32, #tpu.memory_space<vmem>>, vector<1x4x384xf32>
    %12 = vector.shape_cast %11 : vector<1x4x384xf32> to vector<4x384xf32>
    %c2 = arith.constant 2 : index
    %c0_13 = arith.constant 0 : index
    %c0_14 = arith.constant 0 : index
    %13 = vector.load %arg2[%c2, %c0_13, %c0_14] : memref<4x32x4xf32, #tpu.memory_space<vmem>>, vector<1x32x4xf32>
    %14 = vector.shape_cast %13 : vector<1x32x4xf32> to vector<32x4xf32>
    %cst_15 = arith.constant dense<0.000000e+00> : vector<32x384xf32>
    %15 = tpu.matmul %14, %12, %cst_15 {dimension_numbers = #tpu.dot_dimension_numbers<[1], [0], [0], [1], [0, 0, 1, 1], [], []>} : vector<32x4xf32>, vector<4x384xf32>, vector<32x384xf32> -> vector<32x384xf32>
    %16 = arith.addf %10, %15 : vector<32x384xf32>
    %c0_16 = arith.constant 0 : index
    %c0_17 = arith.constant 0 : index
    %c19 = arith.constant 19 : index
    %17 = vector.load %arg1[%c0_16, %c0_17, %c19] : memref<1x4x512xf32, #tpu.memory_space<vmem>>, vector<1x4x384xf32>
    %18 = vector.shape_cast %17 : vector<1x4x384xf32> to vector<4x384xf32>
    %c3 = arith.constant 3 : index
    %c0_18 = arith.constant 0 : index
    %c0_19 = arith.constant 0 : index
    %19 = vector.load %arg2[%c3, %c0_18, %c0_19] : memref<4x32x4xf32, #tpu.memory_space<vmem>>, vector<1x32x4xf32>
    %20 = vector.shape_cast %19 : vector<1x32x4xf32> to vector<32x4xf32>
    %cst_20 = arith.constant dense<0.000000e+00> : vector<32x384xf32>
    %21 = tpu.matmul %20, %18, %cst_20 {dimension_numbers = #tpu.dot_dimension_numbers<[1], [0], [0], [1], [0, 0, 1, 1], [], []>} : vector<32x4xf32>, vector<4x384xf32>, vector<32x384xf32> -> vector<32x384xf32>
    %22 = arith.addf %16, %21 : vector<32x384xf32>
    %c0_21 = arith.constant 0 : index
    %c0_22 = arith.constant 0 : index
    %23 = vector.load %arg4[%c0_21, %c0_22] : memref<4x384xf32, #tpu.memory_space<vmem>>, vector<4x384xf32>
    %cst_23 = arith.constant 0.000000e+00 : f32
    %24 = vector.broadcast %cst_23 : f32 to vector<8x1xf32>
    %25 = vector.extract_strided_slice %22 {offsets = [0, 0], sizes = [8, 384], strides = [1, 1]} : vector<32x384xf32> to vector<8x384xf32>
    %26 = vector.extract_strided_slice %23 {offsets = [0, 0], sizes = [1, 384], strides = [1, 1]} : vector<4x384xf32> to vector<1x384xf32>
    %27 = vector.broadcast %26 : vector<1x384xf32> to vector<8x384xf32>
    %28 = arith.mulf %25, %27 : vector<8x384xf32>
    %cst_24 = arith.constant dense<0.000000e+00> : vector<8xf32>
    %29 = vector.multi_reduction <add>, %28, %cst_24 [1] : vector<8x384xf32> to vector<8xf32>
    %30 = vector.shape_cast %29 : vector<8xf32> to vector<8x1xf32>
    %31 = arith.addf %24, %30 : vector<8x1xf32>
    %32 = vector.extract_strided_slice %22 {offsets = [8, 0], sizes = [8, 384], strides = [1, 1]} : vector<32x384xf32> to vector<8x384xf32>
    %33 = vector.extract_strided_slice %23 {offsets = [1, 0], sizes = [1, 384], strides = [1, 1]} : vector<4x384xf32> to vector<1x384xf32>
    %34 = vector.broadcast %33 : vector<1x384xf32> to vector<8x384xf32>
    %35 = arith.mulf %32, %34 : vector<8x384xf32>
    %cst_25 = arith.constant dense<0.000000e+00> : vector<8xf32>
    %36 = vector.multi_reduction <add>, %35, %cst_25 [1] : vector<8x384xf32> to vector<8xf32>
    %37 = vector.shape_cast %36 : vector<8xf32> to vector<8x1xf32>
    %38 = arith.addf %31, %37 : vector<8x1xf32>
    %39 = vector.extract_strided_slice %22 {offsets = [16, 0], sizes = [8, 384], strides = [1, 1]} : vector<32x384xf32> to vector<8x384xf32>
    %40 = vector.extract_strided_slice %23 {offsets = [2, 0], sizes = [1, 384], strides = [1, 1]} : vector<4x384xf32> to vector<1x384xf32>
    %41 = vector.broadcast %40 : vector<1x384xf32> to vector<8x384xf32>
    %42 = arith.mulf %39, %41 : vector<8x384xf32>
    %cst_26 = arith.constant dense<0.000000e+00> : vector<8xf32>
    %43 = vector.multi_reduction <add>, %42, %cst_26 [1] : vector<8x384xf32> to vector<8xf32>
    %44 = vector.shape_cast %43 : vector<8xf32> to vector<8x1xf32>
    %45 = arith.addf %38, %44 : vector<8x1xf32>
    %46 = vector.extract_strided_slice %22 {offsets = [24, 0], sizes = [8, 384], strides = [1, 1]} : vector<32x384xf32> to vector<8x384xf32>
    %47 = vector.extract_strided_slice %23 {offsets = [3, 0], sizes = [1, 384], strides = [1, 1]} : vector<4x384xf32> to vector<1x384xf32>
    %48 = vector.broadcast %47 : vector<1x384xf32> to vector<8x384xf32>
    %49 = arith.mulf %46, %48 : vector<8x384xf32>
    %cst_27 = arith.constant dense<0.000000e+00> : vector<8xf32>
    %50 = vector.multi_reduction <add>, %49, %cst_27 [1] : vector<8x384xf32> to vector<8xf32>
    %51 = vector.shape_cast %50 : vector<8xf32> to vector<8x1xf32>
    %52 = arith.addf %45, %51 : vector<8x1xf32>
    %cst_28 = arith.constant 9.765625E-4 : f32
    %53 = vector.broadcast %cst_28 : f32 to vector<8x1xf32>
    %54 = arith.mulf %52, %53 : vector<8x1xf32>
    %cst_29 = arith.constant 0.000000e+00 : f32
    %55 = vector.broadcast %cst_29 : f32 to vector<8x1xf32>
    %56 = vector.extract_strided_slice %22 {offsets = [0, 0], sizes = [8, 384], strides = [1, 1]} : vector<32x384xf32> to vector<8x384xf32>
    %57 = vector.broadcast %54 : vector<8x1xf32> to vector<8x384xf32>
    %58 = arith.subf %56, %57 : vector<8x384xf32>
    %59 = vector.extract_strided_slice %23 {offsets = [0, 0], sizes = [1, 384], strides = [1, 1]} : vector<4x384xf32> to vector<1x384xf32>
    %60 = vector.broadcast %59 : vector<1x384xf32> to vector<8x384xf32>
    %61 = arith.mulf %58, %60 : vector<8x384xf32>
    %62 = arith.mulf %61, %61 : vector<8x384xf32>
    %cst_30 = arith.constant dense<0.000000e+00> : vector<8xf32>
    %63 = vector.multi_reduction <add>, %62, %cst_30 [1] : vector<8x384xf32> to vector<8xf32>
    %64 = vector.shape_cast %63 : vector<8xf32> to vector<8x1xf32>
    %65 = arith.addf %55, %64 : vector<8x1xf32>
    %66 = vector.extract_strided_slice %22 {offsets = [8, 0], sizes = [8, 384], strides = [1, 1]} : vector<32x384xf32> to vector<8x384xf32>
    %67 = vector.broadcast %54 : vector<8x1xf32> to vector<8x384xf32>
    %68 = arith.subf %66, %67 : vector<8x384xf32>
    %69 = vector.extract_strided_slice %23 {offsets = [1, 0], sizes = [1, 384], strides = [1, 1]} : vector<4x384xf32> to vector<1x384xf32>
    %70 = vector.broadcast %69 : vector<1x384xf32> to vector<8x384xf32>
    %71 = arith.mulf %68, %70 : vector<8x384xf32>
    %72 = arith.mulf %71, %71 : vector<8x384xf32>
    %cst_31 = arith.constant dense<0.000000e+00> : vector<8xf32>
    %73 = vector.multi_reduction <add>, %72, %cst_31 [1] : vector<8x384xf32> to vector<8xf32>
    %74 = vector.shape_cast %73 : vector<8xf32> to vector<8x1xf32>
    %75 = arith.addf %65, %74 : vector<8x1xf32>
    %76 = vector.extract_strided_slice %22 {offsets = [16, 0], sizes = [8, 384], strides = [1, 1]} : vector<32x384xf32> to vector<8x384xf32>
    %77 = vector.broadcast %54 : vector<8x1xf32> to vector<8x384xf32>
    %78 = arith.subf %76, %77 : vector<8x384xf32>
    %79 = vector.extract_strided_slice %23 {offsets = [2, 0], sizes = [1, 384], strides = [1, 1]} : vector<4x384xf32> to vector<1x384xf32>
    %80 = vector.broadcast %79 : vector<1x384xf32> to vector<8x384xf32>
    %81 = arith.mulf %78, %80 : vector<8x384xf32>
    %82 = arith.mulf %81, %81 : vector<8x384xf32>
    %cst_32 = arith.constant dense<0.000000e+00> : vector<8xf32>
    %83 = vector.multi_reduction <add>, %82, %cst_32 [1] : vector<8x384xf32> to vector<8xf32>
    %84 = vector.shape_cast %83 : vector<8xf32> to vector<8x1xf32>
    %85 = arith.addf %75, %84 : vector<8x1xf32>
    %86 = vector.extract_strided_slice %22 {offsets = [24, 0], sizes = [8, 384], strides = [1, 1]} : vector<32x384xf32> to vector<8x384xf32>
    %87 = vector.broadcast %54 : vector<8x1xf32> to vector<8x384xf32>
    %88 = arith.subf %86, %87 : vector<8x384xf32>
    %89 = vector.extract_strided_slice %23 {offsets = [3, 0], sizes = [1, 384], strides = [1, 1]} : vector<4x384xf32> to vector<1x384xf32>
    %90 = vector.broadcast %89 : vector<1x384xf32> to vector<8x384xf32>
    %91 = arith.mulf %88, %90 : vector<8x384xf32>
    %92 = arith.mulf %91, %91 : vector<8x384xf32>
    %cst_33 = arith.constant dense<0.000000e+00> : vector<8xf32>
    %93 = vector.multi_reduction <add>, %92, %cst_33 [1] : vector<8x384xf32> to vector<8xf32>
    %94 = vector.shape_cast %93 : vector<8xf32> to vector<8x1xf32>
    %95 = arith.addf %85, %94 : vector<8x1xf32>
    %cst_34 = arith.constant 9.765625E-4 : f32
    %96 = vector.broadcast %cst_34 : f32 to vector<8x1xf32>
    %97 = arith.mulf %95, %96 : vector<8x1xf32>
    %c0_35 = arith.constant 0 : index
    %c0_36 = arith.constant 0 : index
    %98 = vector.load %arg3[%c0_35, %c0_36] : memref<8x2xf32, #tpu.memory_space<vmem>>, vector<8x1xf32>
    %cst_37 = arith.constant 9.99999974E-6 : f32
    %99 = vector.broadcast %cst_37 : f32 to vector<8x1xf32>
    %100 = arith.addf %97, %99 : vector<8x1xf32>
    %101 = math.rsqrt %100 : vector<8x1xf32>
    %102 = arith.mulf %98, %101 : vector<8x1xf32>
    %c0_38 = arith.constant 0 : index
    %c1_39 = arith.constant 1 : index
    %103 = vector.load %arg3[%c0_38, %c1_39] : memref<8x2xf32, #tpu.memory_space<vmem>>, vector<8x1xf32>
    %104 = arith.mulf %54, %102 : vector<8x1xf32>
    %105 = arith.subf %103, %104 : vector<8x1xf32>
    %106 = vector.extract_strided_slice %22 {offsets = [0, 0], sizes = [8, 384], strides = [1, 1]} : vector<32x384xf32> to vector<8x384xf32>
    %107 = vector.broadcast %102 : vector<8x1xf32> to vector<8x384xf32>
    %108 = arith.mulf %106, %107 : vector<8x384xf32>
    %109 = vector.broadcast %105 : vector<8x1xf32> to vector<8x384xf32>
    %110 = arith.addf %108, %109 : vector<8x384xf32>
    %cst_40 = arith.constant 0.000000e+00 : f32
    %111 = vector.broadcast %cst_40 : f32 to vector<8x384xf32>
    %112 = arith.maximumf %110, %111 : vector<8x384xf32>
    %c0_41 = arith.constant 0 : index
    %c0_42 = arith.constant 0 : index
    %c0_43 = arith.constant 0 : index
    %113 = vector.load %arg5[%c0_41, %c0_42, %c0_43] : memref<1x32x384xf32, #tpu.memory_space<vmem>>, vector<1x8x384xf32>
    %114 = vector.shape_cast %113 : vector<1x8x384xf32> to vector<8x384xf32>
    %115 = vector.shape_cast %112 : vector<8x384xf32> to vector<1x8x384xf32>
    tpu.vector_store %arg5[%c0_41, %c0_42, %c0_43], %115 {strides = array<i32>} : memref<1x32x384xf32, #tpu.memory_space<vmem>>, vector<1x8x384xf32>,
    %116 = vector.extract_strided_slice %22 {offsets = [8, 0], sizes = [8, 384], strides = [1, 1]} : vector<32x384xf32> to vector<8x384xf32>
    %117 = vector.broadcast %102 : vector<8x1xf32> to vector<8x384xf32>
    %118 = arith.mulf %116, %117 : vector<8x384xf32>
    %119 = vector.broadcast %105 : vector<8x1xf32> to vector<8x384xf32>
    %120 = arith.addf %118, %119 : vector<8x384xf32>
    %cst_44 = arith.constant 0.000000e+00 : f32
    %121 = vector.broadcast %cst_44 : f32 to vector<8x384xf32>
    %122 = arith.maximumf %120, %121 : vector<8x384xf32>
    %c0_45 = arith.constant 0 : index
    %c8 = arith.constant 8 : index
    %c0_46 = arith.constant 0 : index
    %123 = vector.load %arg5[%c0_45, %c8, %c0_46] : memref<1x32x384xf32, #tpu.memory_space<vmem>>, vector<1x8x384xf32>
    %124 = vector.shape_cast %123 : vector<1x8x384xf32> to vector<8x384xf32>
    %125 = vector.shape_cast %122 : vector<8x384xf32> to vector<1x8x384xf32>
    tpu.vector_store %arg5[%c0_45, %c8, %c0_46], %125 {strides = array<i32>} : memref<1x32x384xf32, #tpu.memory_space<vmem>>, vector<1x8x384xf32>,
    %126 = vector.extract_strided_slice %22 {offsets = [16, 0], sizes = [8, 384], strides = [1, 1]} : vector<32x384xf32> to vector<8x384xf32>
    %127 = vector.broadcast %102 : vector<8x1xf32> to vector<8x384xf32>
    %128 = arith.mulf %126, %127 : vector<8x384xf32>
    %129 = vector.broadcast %105 : vector<8x1xf32> to vector<8x384xf32>
    %130 = arith.addf %128, %129 : vector<8x384xf32>
    %cst_47 = arith.constant 0.000000e+00 : f32
    %131 = vector.broadcast %cst_47 : f32 to vector<8x384xf32>
    %132 = arith.maximumf %130, %131 : vector<8x384xf32>
    %c0_48 = arith.constant 0 : index
    %c16 = arith.constant 16 : index
    %c0_49 = arith.constant 0 : index
    %133 = vector.load %arg5[%c0_48, %c16, %c0_49] : memref<1x32x384xf32, #tpu.memory_space<vmem>>, vector<1x8x384xf32>
    %134 = vector.shape_cast %133 : vector<1x8x384xf32> to vector<8x384xf32>
    %135 = vector.shape_cast %132 : vector<8x384xf32> to vector<1x8x384xf32>
    tpu.vector_store %arg5[%c0_48, %c16, %c0_49], %135 {strides = array<i32>} : memref<1x32x384xf32, #tpu.memory_space<vmem>>, vector<1x8x384xf32>,
    %136 = vector.extract_strided_slice %22 {offsets = [24, 0], sizes = [8, 384], strides = [1, 1]} : vector<32x384xf32> to vector<8x384xf32>
    %137 = vector.broadcast %102 : vector<8x1xf32> to vector<8x384xf32>
    %138 = arith.mulf %136, %137 : vector<8x384xf32>
    %139 = vector.broadcast %105 : vector<8x1xf32> to vector<8x384xf32>
    %140 = arith.addf %138, %139 : vector<8x384xf32>
    %cst_50 = arith.constant 0.000000e+00 : f32
    %141 = vector.broadcast %cst_50 : f32 to vector<8x384xf32>
    %142 = arith.maximumf %140, %141 : vector<8x384xf32>
    %c0_51 = arith.constant 0 : index
    %c24 = arith.constant 24 : index
    %c0_52 = arith.constant 0 : index
    %143 = vector.load %arg5[%c0_51, %c24, %c0_52] : memref<1x32x384xf32, #tpu.memory_space<vmem>>, vector<1x8x384xf32>
    %144 = vector.shape_cast %143 : vector<1x8x384xf32> to vector<8x384xf32>
    %145 = vector.shape_cast %142 : vector<8x384xf32> to vector<1x8x384xf32>
    tpu.vector_store %arg5[%c0_51, %c24, %c0_52], %145 {strides = array<i32>} : memref<1x32x384xf32, #tpu.memory_space<vmem>>, vector<1x8x384xf32>,
    return
  }
  func.func @transform_0(%arg0: i32) -> (i32, i32, i32) {
    %c0_i32 = arith.constant 0 : i32
    %c0_i32_0 = arith.constant 0 : i32
    %c0_i32_1 = arith.constant 0 : i32
    return %arg0, %c0_i32, %c0_i32_0 : i32, i32, i32
  }
  func.func @transform_1(%arg0: i32) -> (i32, i32, i32) {
    %c0_i32 = arith.constant 0 : i32
    %c0_i32_0 = arith.constant 0 : i32
    %c0_i32_1 = arith.constant 0 : i32
    %c0_i32_2 = arith.constant 0 : i32
    return %c0_i32, %c0_i32_0, %c0_i32_1 : i32, i32, i32
  }
  func.func @transform_2(%arg0: i32) -> (i32, i32) {
    %c0_i32 = arith.constant 0 : i32
    %c0_i32_0 = arith.constant 0 : i32
    %c0_i32_1 = arith.constant 0 : i32
    return %c0_i32, %c0_i32_0 : i32, i32
  }
  func.func @transform_3(%arg0: i32) -> (i32, i32) {
    %c0_i32 = arith.constant 0 : i32
    %c0_i32_0 = arith.constant 0 : i32
    %c0_i32_1 = arith.constant 0 : i32
    return %c0_i32, %c0_i32_0 : i32, i32
  }
  func.func @transform_4(%arg0: i32) -> (i32, i32, i32) {
    %c0_i32 = arith.constant 0 : i32
    %c0_i32_0 = arith.constant 0 : i32
    %c0_i32_1 = arith.constant 0 : i32
    return %arg0, %c0_i32, %c0_i32_0 : i32, i32, i32
  }
}

</mosaic_0001>

<llo_original>
// kernel: tpu_custom_call.1
$region0: #{tpu_custom_call.1}
  #allocation0 [shape = 'u32[]', space=smem, size = 0x4, offset = 0x4, fixed_abs, tag = 'smem constant byte address 0x4 - core index']
  #allocation1 [shape = 'u32[144,128]{1,0:T(1,128)}', space=vmem, size = 0x12000, scoped, tag = 'internal scratch']
  %s0 = inlined_call_operand.vmem [shape: f32[2,4,512], index: 0, kind: input, shape index: {}]
  %s1 = inlined_call_operand.vmem [shape: f32[4,32,4], index: 1, kind: input, shape index: {}]
  %s2 = inlined_call_operand.vmem [shape: f32[8,2], index: 2, kind: input, shape index: {}]
  %s3 = inlined_call_operand.vmem [shape: f32[4,384], index: 3, kind: input, shape index: {}]
  %s4 = inlined_call_operand.hbm [shape: f32[2,32,384], index: 4, kind: output, shape index: {}]
  %s5 = sld [smem:[#allocation0]]
  $region49: #{tpu_custom_call.1} parent=0
    _
  %s7 = ssub.s32 1, %s5
  %s8 = scalar_select 0, %s7, %s5
  $region1: #{tpu_custom_call.1} parent=0
    #allocation2 [shape = 'u8[98304]{0}', space=vmem, size = 0x18000, scoped, tag = 'output window, operand 0']
    #allocation3 [shape = 's32[2]{0}', space=sflag, size = 0x8, scoped, tag = 'scoped memory for tpu_custom_call.1']
    %9 = vsyncpa [#allocation3], 0
    %s10 = scalar_lea.sflag [#allocation3], 1
    %11 = vsyncpa %s10, 0
    loop: start=0, step=1, limit=4
    $region2: #{tpu_custom_call.1} parent=1 // loop_pre_header
      _
    $region3: #{tpu_custom_call.1} parent=1 // loop_header
      %s13 = sphi 0, %s17
      %p14 = scmp.ge.s32.totalorder %s13, 4
      %s23 = sphi 0, %s25
      %s26 = sphi 0, %s23
      %s27 = sphi 0, %s26
      %s43 = sphi 0, %s27
      %s47 = sphi 0, %s47
      %s49 = sphi 0, %s47
      %s50 = sphi 0, %s49
      %s64 = sphi 0, %s50
      %s68 = sphi 0, %s68
      %s70 = sphi 0, %s68
      %s71 = sphi 0, %s70
      %s85 = sphi 0, %s71
      %s89 = sphi 0, %s89
      %s91 = sphi 0, %s89
      %s92 = sphi 0, %s91
      %s106 = sphi 0, %s92
      %s112 = sphi 0, %s114
      %s115 = sphi 0, %s112
      %s116 = sphi 0, %s115
      %s132 = sphi 0, %s116
    $region4: #{tpu_custom_call.1} parent=1 // loop_header_branch
      %16 = sbr.rel (%p14) target = $region8
    $region5: #{tpu_custom_call.1} parent=1 // loop_body
      %s18 = ssub.s32 %s13, 1
      %s19 = ssub.s32 %s13, 2
      %s20 = sadd.s32 %s13, 1
      %s21 = ssub.s32 %s13, %s20
      %p22 = scmp.eq.s32.totalorder %s21, 0
      %s24 = sadd.s32 %s23, 1
      %s25 = scalar_select %p22, %s23, %s24
      %p28 = pneg %p22
      %p29 = scmp.eq.s32.totalorder %s13, 1
      %p30 = por %p28, %p29
      %p31 = scmp.ne.s32.totalorder %s23, %s26
      %p32 = scmp.eq.s32.totalorder %s13, 0
      %p33 = por %p31, %p32
      %p34 = scmp.ne.s32.totalorder %s23, %s26
      %p35 = scmp.eq.s32.totalorder %s18, 1
      %p36 = por %p34, %p35
      %p37 = scmp.ne.s32.totalorder %s26, %s27
      %p38 = scmp.eq.s32.totalorder %s18, 0
      %p39 = por %p37, %p38
      %p40 = scmp.ne.s32.totalorder %s26, %s27
      %p41 = scmp.eq.s32.totalorder %s19, 1
      %p42 = por %p40, %p41
      %p44 = scmp.ne.s32.totalorder %s27, %s43
      %p45 = scmp.eq.s32.totalorder %s19, 0
      %p46 = por %p44, %p45
      %s48 = sadd.s32 %s47, 1
      %p51 = scmp.eq.s32.totalorder %s13, 1
      %p52 = scmp.ne.s32.totalorder %s47, %s49
      %p53 = scmp.eq.s32.totalorder %s13, 0
      %p54 = por %p52, %p53
      %p55 = scmp.ne.s32.totalorder %s47, %s49
      %p56 = scmp.eq.s32.totalorder %s18, 1
      %p57 = por %p55, %p56
      %p58 = scmp.ne.s32.totalorder %s49, %s50
      %p59 = scmp.eq.s32.totalorder %s18, 0
      %p60 = por %p58, %p59
      %p61 = scmp.ne.s32.totalorder %s49, %s50
      %p62 = scmp.eq.s32.totalorder %s19, 1
      %p63 = por %p61, %p62
      %p65 = scmp.ne.s32.totalorder %s50, %s64
      %p66 = scmp.eq.s32.totalorder %s19, 0
      %p67 = por %p65, %p66
      %s69 = sadd.s32 %s68, 1
      %p72 = scmp.eq.s32.totalorder %s13, 1
      %p73 = scmp.ne.s32.totalorder %s68, %s70
      %p74 = scmp.eq.s32.totalorder %s13, 0
      %p75 = por %p73, %p74
      %p76 = scmp.ne.s32.totalorder %s68, %s70
      %p77 = scmp.eq.s32.totalorder %s18, 1
      %p78 = por %p76, %p77
      %p79 = scmp.ne.s32.totalorder %s70, %s71
      %p80 = scmp.eq.s32.totalorder %s18, 0
      %p81 = por %p79, %p80
      %p82 = scmp.ne.s32.totalorder %s70, %s71
      %p83 = scmp.eq.s32.totalorder %s19, 1
      %p84 = por %p82, %p83
      %p86 = scmp.ne.s32.totalorder %s71, %s85
      %p87 = scmp.eq.s32.totalorder %s19, 0
      %p88 = por %p86, %p87
      %s90 = sadd.s32 %s89, 1
      %p93 = scmp.eq.s32.totalorder %s13, 1
      %p94 = scmp.ne.s32.totalorder %s89, %s91
      %p95 = scmp.eq.s32.totalorder %s13, 0
      %p96 = por %p94, %p95
      %p97 = scmp.ne.s32.totalorder %s89, %s91
      %p98 = scmp.eq.s32.totalorder %s18, 1
      %p99 = por %p97, %p98
      %p100 = scmp.ne.s32.totalorder %s91, %s92
      %p101 = scmp.eq.s32.totalorder %s18, 0
      %p102 = por %p100, %p101
      %p103 = scmp.ne.s32.totalorder %s91, %s92
      %p104 = scmp.eq.s32.totalorder %s19, 1
      %p105 = por %p103, %p104
      %p107 = scmp.ne.s32.totalorder %s92, %s106
      %p108 = scmp.eq.s32.totalorder %s19, 0
      %p109 = por %p107, %p108
      %s110 = ssub.s32 %s13, %s20
      %p111 = scmp.eq.s32.totalorder %s110, 0
      %s113 = sadd.s32 %s112, 1
      %s114 = scalar_select %p111, %s112, %s113
      %p117 = pneg %p111
      %p118 = scmp.eq.s32.totalorder %s13, 1
      %p119 = por %p117, %p118
      %p120 = scmp.ne.s32.totalorder %s112, %s115
      %p121 = scmp.eq.s32.totalorder %s13, 0
      %p122 = por %p120, %p121
      %p123 = scmp.ne.s32.totalorder %s112, %s115
      %p124 = scmp.eq.s32.totalorder %s18, 1
      %p125 = por %p123, %p124
      %p126 = scmp.ne.s32.totalorder %s115, %s116
      %p127 = scmp.eq.s32.totalorder %s18, 0
      %p128 = por %p126, %p127
      %p129 = scmp.ne.s32.totalorder %s115, %s116
      %p130 = scmp.eq.s32.totalorder %s19, 1
      %p131 = por %p129, %p130
      %p133 = scmp.ne.s32.totalorder %s116, %s132
      %p134 = scmp.eq.s32.totalorder %s19, 0
      %p135 = por %p133, %p134
      %p136 = scmp.le.s32.totalorder 1, %s13
      %p137 = scmp.lt.s32.totalorder %s13, 3
      %p138 = pnand %p136, %p137
      %p139 = pneg %p138
      // Predicated region
      $region9: #{tpu_custom_call.1} parent=5 // pred_check
        _
      $region10: #{tpu_custom_call.1} parent=5 // pred_check_branch
        %141 = sbr.rel (%p138) target = $region12
      $region11: #{tpu_custom_call.1} parent=5 // pred_region
        %s142 = ssub.s32 %s13, 1
        // Predicated region
        $region13: #{tpu_custom_call.1} parent=11 // pred_check
          %p143 = pneg %p60
        $region14: #{tpu_custom_call.1} parent=11 // pred_check_branch
          %145 = sbr.rel (%p143) target = $region16
        $region15: #{tpu_custom_call.1} parent=11 // pred_region
          _
        $region16: #{tpu_custom_call.1} parent=11 // pred_fallthru
          _
        // Predicated region
        $region17: #{tpu_custom_call.1} parent=11 // pred_check
          %p146 = pneg %p81
        $region18: #{tpu_custom_call.1} parent=11 // pred_check_branch
          %148 = sbr.rel (%p146) target = $region20
        $region19: #{tpu_custom_call.1} parent=11 // pred_region
          _
        $region20: #{tpu_custom_call.1} parent=11 // pred_fallthru
          _
        // Predicated region
        $region21: #{tpu_custom_call.1} parent=11 // pred_check
          %p149 = pneg %p102
        $region22: #{tpu_custom_call.1} parent=11 // pred_check_branch
          %151 = sbr.rel (%p149) target = $region24
        $region23: #{tpu_custom_call.1} parent=11 // pred_region
          _
        $region24: #{tpu_custom_call.1} parent=11 // pred_fallthru
          _
      $region12: #{tpu_custom_call.1} parent=5 // pred_fallthru
        _
      %p152 = scmp.lt.s32.totalorder %s13, 2
      // Predicated region
      $region25: #{tpu_custom_call.1} parent=5 // pred_check
        %p153 = pneg %p152
      $region26: #{tpu_custom_call.1} parent=5 // pred_check_branch
        %155 = sbr.rel (%p153) target = $region28
      $region27: #{tpu_custom_call.1} parent=5 // pred_region
        // Predicated region
        $region29: #{tpu_custom_call.1} parent=27 // pred_check
          %p156 = pneg %p33
        $region30: #{tpu_custom_call.1} parent=27 // pred_check_branch
          %158 = sbr.rel (%p156) target = $region32
        $region31: #{tpu_custom_call.1} parent=27 // pred_region
          %p159 = scmp.lt.s32.totalorder %s13, 1
          %s160 = scalar_select %p159, %s13, 1
          %s161 = smul.addr %s160, 4
          %s162 = smul.addr %s161, 4
          %s163 = scalar_lea.vmem %s0, %s162
        $region32: #{tpu_custom_call.1} parent=27 // pred_fallthru
          _
      $region28: #{tpu_custom_call.1} parent=5 // pred_fallthru
        _
      %p164 = scmp.le.s32.totalorder 1, %s13
      %p165 = scmp.lt.s32.totalorder %s13, 3
      %p166 = pnand %p164, %p165
      %p167 = pneg %p166
      // Predicated region
      $region33: #{tpu_custom_call.1} parent=5 // pred_check
        _
      $region34: #{tpu_custom_call.1} parent=5 // pred_check_branch
        %169 = sbr.rel (%p166) target = $region36
      $region35: #{tpu_custom_call.1} parent=5 // pred_region
        %s170 = ssub.s32 %s13, 1
        %p171 = scmp.lt.s32.totalorder %s18, 1
        %s172 = scalar_select %p171, %s18, 1
        %s173 = smul.addr %s172, 4
        %s174 = smul.addr %s173, 4
        %s175 = scalar_lea.vmem %s0, %s174
        %p176 = pneg %p39
        %p177 = pneg %p36
        %p178 = pneg %p60
        %p179 = pneg %p57
        %p180 = pneg %p81
        %p181 = pneg %p78
        %p182 = pneg %p102
        %p183 = pneg %p99
        %p184 = pneg %p128
        %p185 = pneg %p125
        %s186 = sand.u32 %s115, 1
        %s187 = scalar_lea.sflag [#allocation3], %s186
        %s188 = sand.u32 %s115, 1
        %s189 = smul.addr %s188, 96
        %s190 = scalar_lea.vmem [#allocation2], %s189
        %p191 = scmp.lt.s32.totalorder %s18, 1
        %s192 = scalar_select %p191, %s18, 1
        %s193 = smul.addr %s192, 4
        %s194 = smul.addr %s193, 4
        %s195 = scalar_lea.vmem %s0, %s194
        %v196 = vld [vmem:[%s195] sm:$0xff]
        %v197 = vld [vmem:[%s195 + $0x8] sm:$0xf]
        %v198 = vld [vmem:[%s1] sm:$0xff]
        %v199 = vld [vmem:[%s1 + $0x8] sm:$0xff]
        %v200 = vld [vmem:[%s1 + $0x10] sm:$0xff]
        %v201 = vld [vmem:[%s1 + $0x18] sm:$0xff]
        %v202 = vld [vmem:[%s195] sm:$0xff]
        %v203 = vld [vmem:[%s195 + $0x8] sm:$0xff]
        %s204 = scalar_lea.vmem %s1, 32
        %v205 = vld [vmem:[%s204] sm:$0xff]
        %v206 = vld [vmem:[%s204 + $0x8] sm:$0xff]
        %v207 = vld [vmem:[%s204 + $0x10] sm:$0xff]
        %v208 = vld [vmem:[%s204 + $0x18] sm:$0xff]
        %v211 = vcombine.high %v202, %v202
        %v212 = vcombine.high %v203, %v203
        %213 = vrot.lane.b32.xlu0 %v202, 127
        %v214 = vpop.permute.xlu0 %213
        %215 = vrot.lane.b32.xlu0 %v211, 127
        %v216 = vpop.permute.xlu0 %215
        %217 = vrot.lane.b32.xlu0 %v203, 127
        %v218 = vpop.permute.xlu0 %217
        %219 = vrot.lane.b32.xlu0 %v212, 127
        %v220 = vpop.permute.xlu0 %219
        %vm221 = vcmask 1039360
        %v222 = vsel %vm221, %v214, %v216
        %v223 = vsel %vm221, %v216, %v218
        %v224 = vsel %vm221, %v218, %v220
        %vm225 = vcmask 31744
        %v227 = vsel %vm225, %v205, 0
        %v230 = vsel %vm225, %v206, 0
        %v233 = vsel %vm225, %v207, 0
        %v236 = vsel %vm225, %v208, 0
        %vm238 = vcmask 1043456
        %v239 = vsel %vm238, %v222, 0
        %v241 = vsel %vm238, %v223, 0
        %v243 = vsel %vm238, %v224, 0
        %245 = vmatprep.subr.mxu0 %v241
        %246 = vmatpush1.msra.mxu0 %v239
        %247 = vmatprep.subr.mxu0 0.0
        %248 = vmatpush1.msra.mxu0 0.0
        %249 = vmatprep.subr.mxu0 0.0
        %250 = vmatpush1.msra.mxu0 0.0
        %251 = vmatprep.subr.mxu0 0.0
        %252 = vmatpush1.msra.mxu0 0.0
        %253 = vmatprep.subr.mxu0 0.0
        %254 = vmatpush1.msra.mxu0 0.0
        %255 = vmatprep.subr.mxu0 0.0
        %256 = vmatpush1.msra.mxu0 0.0
        %257 = vmatprep.subr.mxu0 0.0
        %258 = vmatpush1.msra.mxu0 0.0
        %259 = vmatprep.subr.mxu0 0.0
        %260 = vmatpush1.msra.mxu0 0.0
        %261 = vmatprep.subr.mxu0 0.0
        %262 = vmatpush1.msra.mxu0 0.0
        %263 = vmatprep.subr.mxu0 0.0
        %264 = vmatpush1.msra.mxu0 0.0
        %265 = vmatprep.subr.mxu0 0.0
        %266 = vmatpush1.msra.mxu0 0.0
        %267 = vmatprep.subr.mxu0 0.0
        %268 = vmatpush1.msra.mxu0 0.0
        %269 = vmatprep.subr.mxu0 0.0
        %270 = vmatpush1.msra.mxu0 0.0
        %271 = vmatprep.subr.mxu0 0.0
        %272 = vmatpush1.msra.mxu0 0.0
        %273 = vmatprep.subr.mxu0 0.0
        %274 = vmatpush1.msra.mxu0 0.0
        %275 = vmatprep.subr.mxu0 0.0
        %276 = vmatpush1.msra.mxu0 0.0
        %277 = vmatprep.subr.mxu0 0.0
        %278 = vmatpush1.msra.mxu0 0.0
        %279 = vmatprep.subr.mxu0 0.0
        %280 = vmatpush1.msra.mxu0 0.0
        %281 = vmatprep.subr.mxu0 0.0
        %282 = vmatpush1.msra.mxu0 0.0
        %283 = vmatprep.subr.mxu0 0.0
        %284 = vmatpush1.msra.mxu0 0.0
        %285 = vmatprep.subr.mxu0 0.0
        %286 = vmatpush1.msra.mxu0 0.0
        %287 = vmatprep.subr.mxu0 0.0
        %288 = vmatpush1.msra.mxu0 0.0
        %289 = vmatprep.subr.mxu0 0.0
        %290 = vmatpush1.msra.mxu0 0.0
        %291 = vmatprep.subr.mxu0 0.0
        %292 = vmatpush1.msra.mxu0 0.0
        %293 = vmatprep.subr.mxu0 0.0
        %294 = vmatpush1.msra.mxu0 0.0
        %295 = vmatprep.subr.mxu0 0.0
        %296 = vmatpush1.msra.mxu0 0.0
        %297 = vmatprep.subr.mxu0 0.0
        %298 = vmatpush1.msra.mxu0 0.0
        %299 = vmatprep.subr.mxu0 0.0
        %300 = vmatpush1.msra.mxu0 0.0
        %301 = vmatprep.subr.mxu0 0.0
        %302 = vmatpush1.msra.mxu0 0.0
        %303 = vmatprep.subr.mxu0 0.0
        %304 = vmatpush1.msra.mxu0 0.0
        %305 = vmatprep.subr.mxu0 0.0
        %306 = vmatpush1.msra.mxu0 0.0
        %307 = vmatprep.subr.mxu0 0.0
        %308 = vmatpush1.msra.mxu0 0.0
        %309 = vmatprep.mubr.f32.mxu0 0.0
        %310 = vmatmul.mubr.f32.gmra.mrb[0].mxu0 %v227
        %v311 = vpop.f32.mrb[0].mxu0
        %v312 = vadd.f32 0.0, %v311
        %v313 = vpop.f32.mrb[0].mxu0
        %v314 = vadd.f32 0.0, %v313
        %315 = vmatprep.mubr.f32.mxu0 0.0
        %316 = vmatmul.mubr.f32.gmra.mrb[0].mxu0 %v230
        %v317 = vpop.f32.mrb[0].mxu0
        %v318 = vadd.f32 0.0, %v317
        %v319 = vpop.f32.mrb[0].mxu0
        %v320 = vadd.f32 0.0, %v319
        %321 = vmatprep.mubr.f32.mxu0 0.0
        %322 = vmatmul.mubr.f32.gmra.mrb[0].mxu0 %v233
        %v323 = vpop.f32.mrb[0].mxu0
        %v324 = vadd.f32 0.0, %v323
        %v325 = vpop.f32.mrb[0].mxu0
        %v326 = vadd.f32 0.0, %v325
        %327 = vmatprep.mubr.f32.mxu0 0.0
        %328 = vmatmul.mubr.f32.gmra.mrb[0].mxu0 %v236
        %v329 = vpop.f32.mrb[0].mxu0
        %v330 = vadd.f32 0.0, %v329
        %v331 = vpop.f32.mrb[0].mxu0
        %v332 = vadd.f32 0.0, %v331
        %333 = vdwg.mxu0
        %334 = vmatprep.subr.mxu0 0.0
        %335 = vmatpush1.msra.mxu0 %v243
        %336 = vmatprep.subr.mxu0 0.0
        %337 = vmatpush1.msra.mxu0 0.0
        %338 = vmatprep.subr.mxu0 0.0
        %339 = vmatpush1.msra.mxu0 0.0
        %340 = vmatprep.subr.mxu0 0.0
        %341 = vmatpush1.msra.mxu0 0.0
        %342 = vmatprep.subr.mxu0 0.0
        %343 = vmatpush1.msra.mxu0 0.0
        %344 = vmatprep.subr.mxu0 0.0
        %345 = vmatpush1.msra.mxu0 0.0
        %346 = vmatprep.subr.mxu0 0.0
        %347 = vmatpush1.msra.mxu0 0.0
        %348 = vmatprep.subr.mxu0 0.0
        %349 = vmatpush1.msra.mxu0 0.0
        %350 = vmatprep.subr.mxu0 0.0
        %351 = vmatpush1.msra.mxu0 0.0
        %352 = vmatprep.subr.mxu0 0.0
        %353 = vmatpush1.msra.mxu0 0.0
        %354 = vmatprep.subr.mxu0 0.0
        %355 = vmatpush1.msra.mxu0 0.0
        %356 = vmatprep.subr.mxu0 0.0
        %357 = vmatpush1.msra.mxu0 0.0
        %358 = vmatprep.subr.mxu0 0.0
        %359 = vmatpush1.msra.mxu0 0.0
        %360 = vmatprep.subr.mxu0 0.0
        %361 = vmatpush1.msra.mxu0 0.0
        %362 = vmatprep.subr.mxu0 0.0
        %363 = vmatpush1.msra.mxu0 0.0
        %364 = vmatprep.subr.mxu0 0.0
        %365 = vmatpush1.msra.mxu0 0.0
        %366 = vmatprep.subr.mxu0 0.0
        %367 = vmatpush1.msra.mxu0 0.0
        %368 = vmatprep.subr.mxu0 0.0
        %369 = vmatpush1.msra.mxu0 0.0
        %370 = vmatprep.subr.mxu0 0.0
        %371 = vmatpush1.msra.mxu0 0.0
        %372 = vmatprep.subr.mxu0 0.0
        %373 = vmatpush1.msra.mxu0 0.0
        %374 = vmatprep.subr.mxu0 0.0
        %375 = vmatpush1.msra.mxu0 0.0
        %376 = vmatprep.subr.mxu0 0.0
        %377 = vmatpush1.msra.mxu0 0.0
        %378 = vmatprep.subr.mxu0 0.0
        %379 = vmatpush1.msra.mxu0 0.0
        %380 = vmatprep.subr.mxu0 0.0
        %381 = vmatpush1.msra.mxu0 0.0
        %382 = vmatprep.subr.mxu0 0.0
        %383 = vmatpush1.msra.mxu0 0.0
        %384 = vmatprep.subr.mxu0 0.0
        %385 = vmatpush1.msra.mxu0 0.0
        %386 = vmatprep.subr.mxu0 0.0
        %387 = vmatpush1.msra.mxu0 0.0
        %388 = vmatprep.subr.mxu0 0.0
        %389 = vmatpush1.msra.mxu0 0.0
        %390 = vmatprep.subr.mxu0 0.0
        %391 = vmatpush1.msra.mxu0 0.0
        %392 = vmatprep.subr.mxu0 0.0
        %393 = vmatpush1.msra.mxu0 0.0
        %394 = vmatprep.subr.mxu0 0.0
        %395 = vmatpush1.msra.mxu0 0.0
        %396 = vmatprep.subr.mxu0 0.0
        %397 = vmatpush1.msra.mxu0 0.0
        %398 = vmatprep.mubr.f32.mxu0 0.0
        %399 = vmatmul.mubr.f32.gmra.mrb[0].mxu0 %v227
        %v400 = vpop.f32.mrb[0].mxu0
        %v401 = vadd.f32 0.0, %v400
        %v402 = vpop.f32.mrb[0].mxu0
        %403 = vmatprep.mubr.f32.mxu0 0.0
        %404 = vmatmul.mubr.f32.gmra.mrb[0].mxu0 %v230
        %v405 = vpop.f32.mrb[0].mxu0
        %v406 = vadd.f32 0.0, %v405
        %v407 = vpop.f32.mrb[0].mxu0
        %408 = vmatprep.mubr.f32.mxu0 0.0
        %409 = vmatmul.mubr.f32.gmra.mrb[0].mxu0 %v233
        %v410 = vpop.f32.mrb[0].mxu0
        %v411 = vadd.f32 0.0, %v410
        %v412 = vpop.f32.mrb[0].mxu0
        %413 = vmatprep.mubr.f32.mxu0 0.0
        %414 = vmatmul.mubr.f32.gmra.mrb[0].mxu0 %v236
        %v415 = vpop.f32.mrb[0].mxu0
        %v416 = vadd.f32 0.0, %v415
        %v417 = vpop.f32.mrb[0].mxu0
        %418 = vdwg.mxu0
        %v421 = vcombine.high %v196, %v196
        %v423 = vsel %vm225, %v198, 0
        %v426 = vsel %vm225, %v199, 0
        %v429 = vsel %vm225, %v200, 0
        %v432 = vsel %vm225, %v201, 0
        %v434 = vsel %vm238, %v196, 0
        %v436 = vsel %vm238, %v421, 0
        %v438 = vsel %vm238, %v197, 0
        %440 = vmatprep.subr.mxu0 %v436
        %441 = vmatpush1.msra.mxu0 %v434
        %442 = vmatprep.subr.mxu0 0.0
        %443 = vmatpush1.msra.mxu0 0.0
        %444 = vmatprep.subr.mxu0 0.0
        %445 = vmatpush1.msra.mxu0 0.0
        %446 = vmatprep.subr.mxu0 0.0
        %447 = vmatpush1.msra.mxu0 0.0
        %448 = vmatprep.subr.mxu0 0.0
        %449 = vmatpush1.msra.mxu0 0.0
        %450 = vmatprep.subr.mxu0 0.0
        %451 = vmatpush1.msra.mxu0 0.0
        %452 = vmatprep.subr.mxu0 0.0
        %453 = vmatpush1.msra.mxu0 0.0
        %454 = vmatprep.subr.mxu0 0.0
        %455 = vmatpush1.msra.mxu0 0.0
        %456 = vmatprep.subr.mxu0 0.0
        %457 = vmatpush1.msra.mxu0 0.0
        %458 = vmatprep.subr.mxu0 0.0
        %459 = vmatpush1.msra.mxu0 0.0
        %460 = vmatprep.subr.mxu0 0.0
        %461 = vmatpush1.msra.mxu0 0.0
        %462 = vmatprep.subr.mxu0 0.0
        %463 = vmatpush1.msra.mxu0 0.0
        %464 = vmatprep.subr.mxu0 0.0
        %465 = vmatpush1.msra.mxu0 0.0
        %466 = vmatprep.subr.mxu0 0.0
        %467 = vmatpush1.msra.mxu0 0.0
        %468 = vmatprep.subr.mxu0 0.0
        %469 = vmatpush1.msra.mxu0 0.0
        %470 = vmatprep.subr.mxu0 0.0
        %471 = vmatpush1.msra.mxu0 0.0
        %472 = vmatprep.subr.mxu0 0.0
        %473 = vmatpush1.msra.mxu0 0.0
        %474 = vmatprep.subr.mxu0 0.0
        %475 = vmatpush1.msra.mxu0 0.0
        %476 = vmatprep.subr.mxu0 0.0
        %477 = vmatpush1.msra.mxu0 0.0
        %478 = vmatprep.subr.mxu0 0.0
        %479 = vmatpush1.msra.mxu0 0.0
        %480 = vmatprep.subr.mxu0 0.0
        %481 = vmatpush1.msra.mxu0 0.0
        %482 = vmatprep.subr.mxu0 0.0
        %483 = vmatpush1.msra.mxu0 0.0
        %484 = vmatprep.subr.mxu0 0.0
        %485 = vmatpush1.msra.mxu0 0.0
        %486 = vmatprep.subr.mxu0 0.0
        %487 = vmatpush1.msra.mxu0 0.0
        %488 = vmatprep.subr.mxu0 0.0
        %489 = vmatpush1.msra.mxu0 0.0
        %490 = vmatprep.subr.mxu0 0.0
        %491 = vmatpush1.msra.mxu0 0.0
        %492 = vmatprep.subr.mxu0 0.0
        %493 = vmatpush1.msra.mxu0 0.0
        %494 = vmatprep.subr.mxu0 0.0
        %495 = vmatpush1.msra.mxu0 0.0
        %496 = vmatprep.subr.mxu0 0.0
        %497 = vmatpush1.msra.mxu0 0.0
        %498 = vmatprep.subr.mxu0 0.0
        %499 = vmatpush1.msra.mxu0 0.0
        %500 = vmatprep.subr.mxu0 0.0
        %501 = vmatpush1.msra.mxu0 0.0
        %502 = vmatprep.subr.mxu0 0.0
        %503 = vmatpush1.msra.mxu0 0.0
        %504 = vmatprep.mubr.f32.mxu0 0.0
        %505 = vmatmul.mubr.f32.gmra.mrb[0].mxu0 %v423
        %v506 = vpop.f32.mrb[0].mxu0
        %v507 = vadd.f32 %v312, %v506
        %v508 = vpop.f32.mrb[0].mxu0
        %v509 = vadd.f32 %v314, %v508
        %510 = vmatprep.mubr.f32.mxu0 0.0
        %511 = vmatmul.mubr.f32.gmra.mrb[0].mxu0 %v426
        %v512 = vpop.f32.mrb[0].mxu0
        %v513 = vadd.f32 %v318, %v512
        %v514 = vpop.f32.mrb[0].mxu0
        %v515 = vadd.f32 %v320, %v514
        %516 = vmatprep.mubr.f32.mxu0 0.0
        %517 = vmatmul.mubr.f32.gmra.mrb[0].mxu0 %v429
        %v518 = vpop.f32.mrb[0].mxu0
        %v519 = vadd.f32 %v324, %v518
        %v520 = vpop.f32.mrb[0].mxu0
        %v521 = vadd.f32 %v326, %v520
        %522 = vmatprep.mubr.f32.mxu0 0.0
        %523 = vmatmul.mubr.f32.gmra.mrb[0].mxu0 %v432
        %v524 = vpop.f32.mrb[0].mxu0
        %v525 = vadd.f32 %v330, %v524
        %v526 = vpop.f32.mrb[0].mxu0
        %v527 = vadd.f32 %v332, %v526
        %528 = vdwg.mxu0
        %529 = vmatprep.subr.mxu0 0.0
        %530 = vmatpush1.msra.mxu0 %v438
        %531 = vmatprep.subr.mxu0 0.0
        %532 = vmatpush1.msra.mxu0 0.0
        %533 = vmatprep.subr.mxu0 0.0
        %534 = vmatpush1.msra.mxu0 0.0
        %535 = vmatprep.subr.mxu0 0.0
        %536 = vmatpush1.msra.mxu0 0.0
        %537 = vmatprep.subr.mxu0 0.0
        %538 = vmatpush1.msra.mxu0 0.0
        %539 = vmatprep.subr.mxu0 0.0
        %540 = vmatpush1.msra.mxu0 0.0
        %541 = vmatprep.subr.mxu0 0.0
        %542 = vmatpush1.msra.mxu0 0.0
        %543 = vmatprep.subr.mxu0 0.0
        %544 = vmatpush1.msra.mxu0 0.0
        %545 = vmatprep.subr.mxu0 0.0
        %546 = vmatpush1.msra.mxu0 0.0
        %547 = vmatprep.subr.mxu0 0.0
        %548 = vmatpush1.msra.mxu0 0.0
        %549 = vmatprep.subr.mxu0 0.0
        %550 = vmatpush1.msra.mxu0 0.0
        %551 = vmatprep.subr.mxu0 0.0
        %552 = vmatpush1.msra.mxu0 0.0
        %553 = vmatprep.subr.mxu0 0.0
        %554 = vmatpush1.msra.mxu0 0.0
        %555 = vmatprep.subr.mxu0 0.0
        %556 = vmatpush1.msra.mxu0 0.0
        %557 = vmatprep.subr.mxu0 0.0
        %558 = vmatpush1.msra.mxu0 0.0
        %559 = vmatprep.subr.mxu0 0.0
        %560 = vmatpush1.msra.mxu0 0.0
        %561 = vmatprep.subr.mxu0 0.0
        %562 = vmatpush1.msra.mxu0 0.0
        %563 = vmatprep.subr.mxu0 0.0
        %564 = vmatpush1.msra.mxu0 0.0
        %565 = vmatprep.subr.mxu0 0.0
        %566 = vmatpush1.msra.mxu0 0.0
        %567 = vmatprep.subr.mxu0 0.0
        %568 = vmatpush1.msra.mxu0 0.0
        %569 = vmatprep.subr.mxu0 0.0
        %570 = vmatpush1.msra.mxu0 0.0
        %571 = vmatprep.subr.mxu0 0.0
        %572 = vmatpush1.msra.mxu0 0.0
        %573 = vmatprep.subr.mxu0 0.0
        %574 = vmatpush1.msra.mxu0 0.0
        %575 = vmatprep.subr.mxu0 0.0
        %576 = vmatpush1.msra.mxu0 0.0
        %577 = vmatprep.subr.mxu0 0.0
        %578 = vmatpush1.msra.mxu0 0.0
        %579 = vmatprep.subr.mxu0 0.0
        %580 = vmatpush1.msra.mxu0 0.0
        %581 = vmatprep.subr.mxu0 0.0
        %582 = vmatpush1.msra.mxu0 0.0
        %583 = vmatprep.subr.mxu0 0.0
        %584 = vmatpush1.msra.mxu0 0.0
        %585 = vmatprep.subr.mxu0 0.0
        %586 = vmatpush1.msra.mxu0 0.0
        %587 = vmatprep.subr.mxu0 0.0
        %588 = vmatpush1.msra.mxu0 0.0
        %589 = vmatprep.subr.mxu0 0.0
        %590 = vmatpush1.msra.mxu0 0.0
        %591 = vmatprep.subr.mxu0 0.0
        %592 = vmatpush1.msra.mxu0 0.0
        %593 = vmatprep.mubr.f32.mxu0 0.0
        %594 = vmatmul.mubr.f32.gmra.mrb[0].mxu0 %v423
        %v595 = vpop.f32.mrb[0].mxu0
        %v596 = vadd.f32 %v401, %v595
        %v597 = vpop.f32.mrb[0].mxu0
        %598 = vmatprep.mubr.f32.mxu0 0.0
        %599 = vmatmul.mubr.f32.gmra.mrb[0].mxu0 %v426
        %v600 = vpop.f32.mrb[0].mxu0
        %v601 = vadd.f32 %v406, %v600
        %v602 = vpop.f32.mrb[0].mxu0
        %603 = vmatprep.mubr.f32.mxu0 0.0
        %604 = vmatmul.mubr.f32.gmra.mrb[0].mxu0 %v429
        %v605 = vpop.f32.mrb[0].mxu0
        %v606 = vadd.f32 %v411, %v605
        %v607 = vpop.f32.mrb[0].mxu0
        %608 = vmatprep.mubr.f32.mxu0 0.0
        %609 = vmatmul.mubr.f32.gmra.mrb[0].mxu0 %v432
        %v610 = vpop.f32.mrb[0].mxu0
        %v611 = vadd.f32 %v416, %v610
        %v612 = vpop.f32.mrb[0].mxu0
        %613 = vdwg.mxu0
        %v614 = vld [vmem:[%s195] sm:$0xff]
        %v615 = vld [vmem:[%s195 + $0x8] sm:$0xff]
        %s616 = scalar_lea.vmem %s1, 64
        %v617 = vld [vmem:[%s616] sm:$0xff]
        %v618 = vld [vmem:[%s616 + $0x8] sm:$0xff]
        %v619 = vld [vmem:[%s616 + $0x10] sm:$0xff]
        %v620 = vld [vmem:[%s616 + $0x18] sm:$0xff]
        %v623 = vcombine.high %v614, %v614
        %v624 = vcombine.high %v615, %v615
        %625 = vrot.lane.b32.xlu0 %v614, 110
        %v626 = vpop.permute.xlu0 %625
        %627 = vrot.lane.b32.xlu0 %v623, 110
        %v628 = vpop.permute.xlu0 %627
        %629 = vrot.lane.b32.xlu0 %v615, 110
        %v630 = vpop.permute.xlu0 %629
        %631 = vrot.lane.b32.xlu0 %v624, 110
        %v632 = vpop.permute.xlu0 %631
        %vm633 = vcmask 900096
        %v634 = vsel %vm633, %v626, %v628
        %v635 = vsel %vm633, %v628, %v630
        %v636 = vsel %vm633, %v630, %v632
        %v638 = vsel %vm225, %v617, 0
        %v641 = vsel %vm225, %v618, 0
        %v644 = vsel %vm225, %v619, 0
        %v647 = vsel %vm225, %v620, 0
        %v649 = vsel %vm238, %v634, 0
        %v651 = vsel %vm238, %v635, 0
        %v653 = vsel %vm238, %v636, 0
        %655 = vmatprep.subr.mxu0 %v651
        %656 = vmatpush1.msra.mxu0 %v649
        %657 = vmatprep.subr.mxu0 0.0
        %658 = vmatpush1.msra.mxu0 0.0
        %659 = vmatprep.subr.mxu0 0.0
        %660 = vmatpush1.msra.mxu0 0.0
        %661 = vmatprep.subr.mxu0 0.0
        %662 = vmatpush1.msra.mxu0 0.0
        %663 = vmatprep.subr.mxu0 0.0
        %664 = vmatpush1.msra.mxu0 0.0
        %665 = vmatprep.subr.mxu0 0.0
        %666 = vmatpush1.msra.mxu0 0.0
        %667 = vmatprep.subr.mxu0 0.0
        %668 = vmatpush1.msra.mxu0 0.0
        %669 = vmatprep.subr.mxu0 0.0
        %670 = vmatpush1.msra.mxu0 0.0
        %671 = vmatprep.subr.mxu0 0.0
        %672 = vmatpush1.msra.mxu0 0.0
        %673 = vmatprep.subr.mxu0 0.0
        %674 = vmatpush1.msra.mxu0 0.0
        %675 = vmatprep.subr.mxu0 0.0
        %676 = vmatpush1.msra.mxu0 0.0
        %677 = vmatprep.subr.mxu0 0.0
        %678 = vmatpush1.msra.mxu0 0.0
        %679 = vmatprep.subr.mxu0 0.0
        %680 = vmatpush1.msra.mxu0 0.0
        %681 = vmatprep.subr.mxu0 0.0
        %682 = vmatpush1.msra.mxu0 0.0
        %683 = vmatprep.subr.mxu0 0.0
        %684 = vmatpush1.msra.mxu0 0.0
        %685 = vmatprep.subr.mxu0 0.0
        %686 = vmatpush1.msra.mxu0 0.0
        %687 = vmatprep.subr.mxu0 0.0
        %688 = vmatpush1.msra.mxu0 0.0
        %689 = vmatprep.subr.mxu0 0.0
        %690 = vmatpush1.msra.mxu0 0.0
        %691 = vmatprep.subr.mxu0 0.0
        %692 = vmatpush1.msra.mxu0 0.0
        %693 = vmatprep.subr.mxu0 0.0
        %694 = vmatpush1.msra.mxu0 0.0
        %695 = vmatprep.subr.mxu0 0.0
        %696 = vmatpush1.msra.mxu0 0.0
        %697 = vmatprep.subr.mxu0 0.0
        %698 = vmatpush1.msra.mxu0 0.0
        %699 = vmatprep.subr.mxu0 0.0
        %700 = vmatpush1.msra.mxu0 0.0
        %701 = vmatprep.subr.mxu0 0.0
        %702 = vmatpush1.msra.mxu0 0.0
        %703 = vmatprep.subr.mxu0 0.0
        %704 = vmatpush1.msra.mxu0 0.0
        %705 = vmatprep.subr.mxu0 0.0
        %706 = vmatpush1.msra.mxu0 0.0
        %707 = vmatprep.subr.mxu0 0.0
        %708 = vmatpush1.msra.mxu0 0.0
        %709 = vmatprep.subr.mxu0 0.0
        %710 = vmatpush1.msra.mxu0 0.0
        %711 = vmatprep.subr.mxu0 0.0
        %712 = vmatpush1.msra.mxu0 0.0
        %713 = vmatprep.subr.mxu0 0.0
        %714 = vmatpush1.msra.mxu0 0.0
        %715 = vmatprep.subr.mxu0 0.0
        %716 = vmatpush1.msra.mxu0 0.0
        %717 = vmatprep.subr.mxu0 0.0
        %718 = vmatpush1.msra.mxu0 0.0
        %719 = vmatprep.mubr.f32.mxu0 0.0
        %720 = vmatmul.mubr.f32.gmra.mrb[0].mxu0 %v638
        %v721 = vpop.f32.mrb[0].mxu0
        %v722 = vadd.f32 0.0, %v721
        %v723 = vpop.f32.mrb[0].mxu0
        %v724 = vadd.f32 0.0, %v723
        %725 = vmatprep.mubr.f32.mxu0 0.0
        %726 = vmatmul.mubr.f32.gmra.mrb[0].mxu0 %v641
        %v727 = vpop.f32.mrb[0].mxu0
        %v728 = vadd.f32 0.0, %v727
        %v729 = vpop.f32.mrb[0].mxu0
        %v730 = vadd.f32 0.0, %v729
        %731 = vmatprep.mubr.f32.mxu0 0.0
        %732 = vmatmul.mubr.f32.gmra.mrb[0].mxu0 %v644
        %v733 = vpop.f32.mrb[0].mxu0
        %v734 = vadd.f32 0.0, %v733
        %v735 = vpop.f32.mrb[0].mxu0
        %v736 = vadd.f32 0.0, %v735
        %737 = vmatprep.mubr.f32.mxu0 0.0
        %738 = vmatmul.mubr.f32.gmra.mrb[0].mxu0 %v647
        %v739 = vpop.f32.mrb[0].mxu0
        %v740 = vadd.f32 0.0, %v739
        %v741 = vpop.f32.mrb[0].mxu0
        %v742 = vadd.f32 0.0, %v741
        %743 = vdwg.mxu0
        %744 = vmatprep.subr.mxu0 0.0
        %745 = vmatpush1.msra.mxu0 %v653
        %746 = vmatprep.subr.mxu0 0.0
        %747 = vmatpush1.msra.mxu0 0.0
        %748 = vmatprep.subr.mxu0 0.0
        %749 = vmatpush1.msra.mxu0 0.0
        %750 = vmatprep.subr.mxu0 0.0
        %751 = vmatpush1.msra.mxu0 0.0
        %752 = vmatprep.subr.mxu0 0.0
        %753 = vmatpush1.msra.mxu0 0.0
        %754 = vmatprep.subr.mxu0 0.0
        %755 = vmatpush1.msra.mxu0 0.0
        %756 = vmatprep.subr.mxu0 0.0
        %757 = vmatpush1.msra.mxu0 0.0
        %758 = vmatprep.subr.mxu0 0.0
        %759 = vmatpush1.msra.mxu0 0.0
        %760 = vmatprep.subr.mxu0 0.0
        %761 = vmatpush1.msra.mxu0 0.0
        %762 = vmatprep.subr.mxu0 0.0
        %763 = vmatpush1.msra.mxu0 0.0
        %764 = vmatprep.subr.mxu0 0.0
        %765 = vmatpush1.msra.mxu0 0.0
        %766 = vmatprep.subr.mxu0 0.0
        %767 = vmatpush1.msra.mxu0 0.0
        %768 = vmatprep.subr.mxu0 0.0
        %769 = vmatpush1.msra.mxu0 0.0
        %770 = vmatprep.subr.mxu0 0.0
        %771 = vmatpush1.msra.mxu0 0.0
        %772 = vmatprep.subr.mxu0 0.0
        %773 = vmatpush1.msra.mxu0 0.0
        %774 = vmatprep.subr.mxu0 0.0
        %775 = vmatpush1.msra.mxu0 0.0
        %776 = vmatprep.subr.mxu0 0.0
        %777 = vmatpush1.msra.mxu0 0.0
        %778 = vmatprep.subr.mxu0 0.0
        %779 = vmatpush1.msra.mxu0 0.0
        %780 = vmatprep.subr.mxu0 0.0
        %781 = vmatpush1.msra.mxu0 0.0
        %782 = vmatprep.subr.mxu0 0.0
        %783 = vmatpush1.msra.mxu0 0.0
        %784 = vmatprep.subr.mxu0 0.0
        %785 = vmatpush1.msra.mxu0 0.0
        %786 = vmatprep.subr.mxu0 0.0
        %787 = vmatpush1.msra.mxu0 0.0
        %788 = vmatprep.subr.mxu0 0.0
        %789 = vmatpush1.msra.mxu0 0.0
        %790 = vmatprep.subr.mxu0 0.0
        %791 = vmatpush1.msra.mxu0 0.0
        %792 = vmatprep.subr.mxu0 0.0
        %793 = vmatpush1.msra.mxu0 0.0
        %794 = vmatprep.subr.mxu0 0.0
        %795 = vmatpush1.msra.mxu0 0.0
        %796 = vmatprep.subr.mxu0 0.0
        %797 = vmatpush1.msra.mxu0 0.0
        %798 = vmatprep.subr.mxu0 0.0
        %799 = vmatpush1.msra.mxu0 0.0
        %800 = vmatprep.subr.mxu0 0.0
        %801 = vmatpush1.msra.mxu0 0.0
        %802 = vmatprep.subr.mxu0 0.0
        %803 = vmatpush1.msra.mxu0 0.0
        %804 = vmatprep.subr.mxu0 0.0
        %805 = vmatpush1.msra.mxu0 0.0
        %806 = vmatprep.subr.mxu0 0.0
        %807 = vmatpush1.msra.mxu0 0.0
        %808 = vmatprep.mubr.f32.mxu0 0.0
        %809 = vmatmul.mubr.f32.gmra.mrb[0].mxu0 %v638
        %v810 = vpop.f32.mrb[0].mxu0
        %v811 = vadd.f32 0.0, %v810
        %v812 = vpop.f32.mrb[0].mxu0
        %813 = vmatprep.mubr.f32.mxu0 0.0
        %814 = vmatmul.mubr.f32.gmra.mrb[0].mxu0 %v641
        %v815 = vpop.f32.mrb[0].mxu0
        %v816 = vadd.f32 0.0, %v815
        %v817 = vpop.f32.mrb[0].mxu0
        %818 = vmatprep.mubr.f32.mxu0 0.0
        %819 = vmatmul.mubr.f32.gmra.mrb[0].mxu0 %v644
        %v820 = vpop.f32.mrb[0].mxu0
        %v821 = vadd.f32 0.0, %v820
        %v822 = vpop.f32.mrb[0].mxu0
        %823 = vmatprep.mubr.f32.mxu0 0.0
        %824 = vmatmul.mubr.f32.gmra.mrb[0].mxu0 %v647
        %v825 = vpop.f32.mrb[0].mxu0
        %v826 = vadd.f32 0.0, %v825
        %v827 = vpop.f32.mrb[0].mxu0
        %828 = vdwg.mxu0
        %v829 = vadd.f32 %v507, %v722
        %v830 = vadd.f32 %v509, %v724
        %v831 = vadd.f32 %v596, %v811
        %v832 = vadd.f32 %v513, %v728
        %v833 = vadd.f32 %v515, %v730
        %v834 = vadd.f32 %v601, %v816
        %v835 = vadd.f32 %v519, %v734
        %v836 = vadd.f32 %v521, %v736
        %v837 = vadd.f32 %v606, %v821
        %v838 = vadd.f32 %v525, %v740
        %v839 = vadd.f32 %v527, %v742
        %v840 = vadd.f32 %v611, %v826
        %v841 = vld [vmem:[%s195] sm:$0xff]
        %v842 = vld [vmem:[%s195 + $0x8] sm:$0xff]
        %s843 = scalar_lea.vmem %s1, 96
        %v844 = vld [vmem:[%s843] sm:$0xff]
        %v845 = vld [vmem:[%s843 + $0x8] sm:$0xff]
        %v846 = vld [vmem:[%s843 + $0x10] sm:$0xff]
        %v847 = vld [vmem:[%s843 + $0x18] sm:$0xff]
        %v850 = vcombine.high %v841, %v841
        %v851 = vcombine.high %v842, %v842
        %852 = vrot.lane.b32.xlu0 %v841, 109
        %v853 = vpop.permute.xlu0 %852
        %854 = vrot.lane.b32.xlu0 %v850, 109
        %v855 = vpop.permute.xlu0 %854
        %856 = vrot.lane.b32.xlu0 %v842, 109
        %v857 = vpop.permute.xlu0 %856
        %858 = vrot.lane.b32.xlu0 %v851, 109
        %v859 = vpop.permute.xlu0 %858
        %vm860 = vcmask 891904
        %v861 = vsel %vm860, %v853, %v855
        %v862 = vsel %vm860, %v855, %v857
        %v863 = vsel %vm860, %v857, %v859
        %v865 = vsel %vm225, %v844, 0
        %v868 = vsel %vm225, %v845, 0
        %v871 = vsel %vm225, %v846, 0
        %v874 = vsel %vm225, %v847, 0
        %v876 = vsel %vm238, %v861, 0
        %v878 = vsel %vm238, %v862, 0
        %v880 = vsel %vm238, %v863, 0
        %882 = vmatprep.subr.mxu0 %v878
        %883 = vmatpush1.msra.mxu0 %v876
        %884 = vmatprep.subr.mxu0 0.0
        %885 = vmatpush1.msra.mxu0 0.0
        %886 = vmatprep.subr.mxu0 0.0
        %887 = vmatpush1.msra.mxu0 0.0
        %888 = vmatprep.subr.mxu0 0.0
        %889 = vmatpush1.msra.mxu0 0.0
        %890 = vmatprep.subr.mxu0 0.0
        %891 = vmatpush1.msra.mxu0 0.0
        %892 = vmatprep.subr.mxu0 0.0
        %893 = vmatpush1.msra.mxu0 0.0
        %894 = vmatprep.subr.mxu0 0.0
        %895 = vmatpush1.msra.mxu0 0.0
        %896 = vmatprep.subr.mxu0 0.0
        %897 = vmatpush1.msra.mxu0 0.0
        %898 = vmatprep.subr.mxu0 0.0
        %899 = vmatpush1.msra.mxu0 0.0
        %900 = vmatprep.subr.mxu0 0.0
        %901 = vmatpush1.msra.mxu0 0.0
        %902 = vmatprep.subr.mxu0 0.0
        %903 = vmatpush1.msra.mxu0 0.0
        %904 = vmatprep.subr.mxu0 0.0
        %905 = vmatpush1.msra.mxu0 0.0
        %906 = vmatprep.subr.mxu0 0.0
        %907 = vmatpush1.msra.mxu0 0.0
        %908 = vmatprep.subr.mxu0 0.0
        %909 = vmatpush1.msra.mxu0 0.0
        %910 = vmatprep.subr.mxu0 0.0
        %911 = vmatpush1.msra.mxu0 0.0
        %912 = vmatprep.subr.mxu0 0.0
        %913 = vmatpush1.msra.mxu0 0.0
        %914 = vmatprep.subr.mxu0 0.0
        %915 = vmatpush1.msra.mxu0 0.0
        %916 = vmatprep.subr.mxu0 0.0
        %917 = vmatpush1.msra.mxu0 0.0
        %918 = vmatprep.subr.mxu0 0.0
        %919 = vmatpush1.msra.mxu0 0.0
        %920 = vmatprep.subr.mxu0 0.0
        %921 = vmatpush1.msra.mxu0 0.0
        %922 = vmatprep.subr.mxu0 0.0
        %923 = vmatpush1.msra.mxu0 0.0
        %924 = vmatprep.subr.mxu0 0.0
        %925 = vmatpush1.msra.mxu0 0.0
        %926 = vmatprep.subr.mxu0 0.0
        %927 = vmatpush1.msra.mxu0 0.0
        %928 = vmatprep.subr.mxu0 0.0
        %929 = vmatpush1.msra.mxu0 0.0
        %930 = vmatprep.subr.mxu0 0.0
        %931 = vmatpush1.msra.mxu0 0.0
        %932 = vmatprep.subr.mxu0 0.0
        %933 = vmatpush1.msra.mxu0 0.0
        %934 = vmatprep.subr.mxu0 0.0
        %935 = vmatpush1.msra.mxu0 0.0
        %936 = vmatprep.subr.mxu0 0.0
        %937 = vmatpush1.msra.mxu0 0.0
        %938 = vmatprep.subr.mxu0 0.0
        %939 = vmatpush1.msra.mxu0 0.0
        %940 = vmatprep.subr.mxu0 0.0
        %941 = vmatpush1.msra.mxu0 0.0
        %942 = vmatprep.subr.mxu0 0.0
        %943 = vmatpush1.msra.mxu0 0.0
        %944 = vmatprep.subr.mxu0 0.0
        %945 = vmatpush1.msra.mxu0 0.0
        %946 = vmatprep.mubr.f32.mxu0 0.0
        %947 = vmatmul.mubr.f32.gmra.mrb[0].mxu0 %v865
        %v948 = vpop.f32.mrb[0].mxu0
        %v949 = vadd.f32 0.0, %v948
        %v950 = vpop.f32.mrb[0].mxu0
        %v951 = vadd.f32 0.0, %v950
        %952 = vmatprep.mubr.f32.mxu0 0.0
        %953 = vmatmul.mubr.f32.gmra.mrb[0].mxu0 %v868
        %v954 = vpop.f32.mrb[0].mxu0
        %v955 = vadd.f32 0.0, %v954
        %v956 = vpop.f32.mrb[0].mxu0
        %v957 = vadd.f32 0.0, %v956
        %958 = vmatprep.mubr.f32.mxu0 0.0
        %959 = vmatmul.mubr.f32.gmra.mrb[0].mxu0 %v871
        %v960 = vpop.f32.mrb[0].mxu0
        %v961 = vadd.f32 0.0, %v960
        %v962 = vpop.f32.mrb[0].mxu0
        %v963 = vadd.f32 0.0, %v962
        %964 = vmatprep.mubr.f32.mxu0 0.0
        %965 = vmatmul.mubr.f32.gmra.mrb[0].mxu0 %v874
        %v966 = vpop.f32.mrb[0].mxu0
        %v967 = vadd.f32 0.0, %v966
        %v968 = vpop.f32.mrb[0].mxu0
        %v969 = vadd.f32 0.0, %v968
        %970 = vdwg.mxu0
        %971 = vmatprep.subr.mxu0 0.0
        %972 = vmatpush1.msra.mxu0 %v880
        %973 = vmatprep.subr.mxu0 0.0
        %974 = vmatpush1.msra.mxu0 0.0
        %975 = vmatprep.subr.mxu0 0.0
        %976 = vmatpush1.msra.mxu0 0.0
        %977 = vmatprep.subr.mxu0 0.0
        %978 = vmatpush1.msra.mxu0 0.0
        %979 = vmatprep.subr.mxu0 0.0
        %980 = vmatpush1.msra.mxu0 0.0
        %981 = vmatprep.subr.mxu0 0.0
        %982 = vmatpush1.msra.mxu0 0.0
        %983 = vmatprep.subr.mxu0 0.0
        %984 = vmatpush1.msra.mxu0 0.0
        %985 = vmatprep.subr.mxu0 0.0
        %986 = vmatpush1.msra.mxu0 0.0
        %987 = vmatprep.subr.mxu0 0.0
        %988 = vmatpush1.msra.mxu0 0.0
        %989 = vmatprep.subr.mxu0 0.0
        %990 = vmatpush1.msra.mxu0 0.0
        %991 = vmatprep.subr.mxu0 0.0
        %992 = vmatpush1.msra.mxu0 0.0
        %993 = vmatprep.subr.mxu0 0.0
        %994 = vmatpush1.msra.mxu0 0.0
        %995 = vmatprep.subr.mxu0 0.0
        %996 = vmatpush1.msra.mxu0 0.0
        %997 = vmatprep.subr.mxu0 0.0
        %998 = vmatpush1.msra.mxu0 0.0
        %999 = vmatprep.subr.mxu0 0.0
        %1000 = vmatpush1.msra.mxu0 0.0
        %1001 = vmatprep.subr.mxu0 0.0
        %1002 = vmatpush1.msra.mxu0 0.0
        %1003 = vmatprep.subr.mxu0 0.0
        %1004 = vmatpush1.msra.mxu0 0.0
        %1005 = vmatprep.subr.mxu0 0.0
        %1006 = vmatpush1.msra.mxu0 0.0
        %1007 = vmatprep.subr.mxu0 0.0
        %1008 = vmatpush1.msra.mxu0 0.0
        %1009 = vmatprep.subr.mxu0 0.0
        %1010 = vmatpush1.msra.mxu0 0.0
        %1011 = vmatprep.subr.mxu0 0.0
        %1012 = vmatpush1.msra.mxu0 0.0
        %1013 = vmatprep.subr.mxu0 0.0
        %1014 = vmatpush1.msra.mxu0 0.0
        %1015 = vmatprep.subr.mxu0 0.0
        %1016 = vmatpush1.msra.mxu0 0.0
        %1017 = vmatprep.subr.mxu0 0.0
        %1018 = vmatpush1.msra.mxu0 0.0
        %1019 = vmatprep.subr.mxu0 0.0
        %1020 = vmatpush1.msra.mxu0 0.0
        %1021 = vmatprep.subr.mxu0 0.0
        %1022 = vmatpush1.msra.mxu0 0.0
        %1023 = vmatprep.subr.mxu0 0.0
        %1024 = vmatpush1.msra.mxu0 0.0
        %1025 = vmatprep.subr.mxu0 0.0
        %1026 = vmatpush1.msra.mxu0 0.0
        %1027 = vmatprep.subr.mxu0 0.0
        %1028 = vmatpush1.msra.mxu0 0.0
        %1029 = vmatprep.subr.mxu0 0.0
        %1030 = vmatpush1.msra.mxu0 0.0
        %1031 = vmatprep.subr.mxu0 0.0
        %1032 = vmatpush1.msra.mxu0 0.0
        %1033 = vmatprep.subr.mxu0 0.0
        %1034 = vmatpush1.msra.mxu0 0.0
        %1035 = vmatprep.mubr.f32.mxu0 0.0
        %1036 = vmatmul.mubr.f32.gmra.mrb[0].mxu0 %v865
        %v1037 = vpop.f32.mrb[0].mxu0
        %v1038 = vadd.f32 0.0, %v1037
        %v1039 = vpop.f32.mrb[0].mxu0
        %1040 = vmatprep.mubr.f32.mxu0 0.0
        %1041 = vmatmul.mubr.f32.gmra.mrb[0].mxu0 %v868
        %v1042 = vpop.f32.mrb[0].mxu0
        %v1043 = vadd.f32 0.0, %v1042
        %v1044 = vpop.f32.mrb[0].mxu0
        %1045 = vmatprep.mubr.f32.mxu0 0.0
        %1046 = vmatmul.mubr.f32.gmra.mrb[0].mxu0 %v871
        %v1047 = vpop.f32.mrb[0].mxu0
        %v1048 = vadd.f32 0.0, %v1047
        %v1049 = vpop.f32.mrb[0].mxu0
        %1050 = vmatprep.mubr.f32.mxu0 0.0
        %1051 = vmatmul.mubr.f32.gmra.mrb[0].mxu0 %v874
        %v1052 = vpop.f32.mrb[0].mxu0
        %v1053 = vadd.f32 0.0, %v1052
        %v1054 = vpop.f32.mrb[0].mxu0
        %1055 = vdwg.mxu0
        %v1056 = vadd.f32 %v829, %v949
        %v1057 = vadd.f32 %v830, %v951
        %v1058 = vadd.f32 %v831, %v1038
        %v1059 = vadd.f32 %v832, %v955
        %v1060 = vadd.f32 %v833, %v957
        %v1061 = vadd.f32 %v834, %v1043
        %v1062 = vadd.f32 %v835, %v961
        %v1063 = vadd.f32 %v836, %v963
        %v1064 = vadd.f32 %v837, %v1048
        %v1065 = vadd.f32 %v838, %v967
        %v1066 = vadd.f32 %v839, %v969
        %v1067 = vadd.f32 %v840, %v1053
        %v1068 = vld [vmem:[%s3] sm:$0xff]
        %v1069 = vld [vmem:[%s3 + $0x8] sm:$0xf]
        %v1072 = vlaneseq
        %v1073 = vshrl.u32 %v1072, 7
        %v1074 = vsub.s32 0, %v1073
        %v1075 = vrot.slane %v1068, %v1074
        %v1076 = vlaneseq
        %v1077 = vshrl.u32 %v1076, 7
        %v1078 = vsub.s32 4, %v1077
        %v1079 = vrot.slane %v1068, %v1078
        %v1080 = vlaneseq
        %v1081 = vshrl.u32 %v1080, 7
        %v1082 = vsub.s32 0, %v1081
        %v1083 = vrot.slane %v1069, %v1082
        %v1087 = vlaneseq
        %v1088 = vshrl.u32 %v1087, 7
        %v1089 = vsub.s32 0, %v1088
        %v1090 = vrot.slane %v1075, %v1089
        %v1091 = vlaneseq
        %v1092 = vshrl.u32 %v1091, 7
        %v1093 = vsub.s32 0, %v1092
        %v1094 = vrot.slane %v1079, %v1093
        %v1095 = vlaneseq
        %v1096 = vshrl.u32 %v1095, 7
        %v1097 = vsub.s32 0, %v1096
        %v1098 = vrot.slane %v1083, %v1097
        %v1099 = vmul.f32 %v1056, %v1090
        %v1100 = vmul.f32 %v1057, %v1094
        %v1101 = vmul.f32 %v1058, %v1098
        %v1102 = vadd.f32 %v1099, %v1100
        %v1103 = vadd.f32 %v1102, %v1101
        %1104 = vadd.xlane.f32.xlu0 %v1103
        %v1105 = vpop.xlane.xlu0 %1104
        %v1106 = vadd.f32 %v1105, 0.0
        %v1107 = vlaneseq
        %v1108 = vshrl.u32 %v1107, 7
        %v1109 = vsub.s32 1, %v1108
        %v1110 = vrot.slane %v1068, %v1109
        %v1111 = vlaneseq
        %v1112 = vshrl.u32 %v1111, 7
        %v1113 = vsub.s32 5, %v1112
        %v1114 = vrot.slane %v1068, %v1113
        %v1115 = vlaneseq
        %v1116 = vshrl.u32 %v1115, 7
        %v1117 = vsub.s32 1, %v1116
        %v1118 = vrot.slane %v1069, %v1117
        %v1122 = vlaneseq
        %v1123 = vshrl.u32 %v1122, 7
        %v1124 = vsub.s32 1, %v1123
        %v1125 = vrot.slane %v1110, %v1124
        %v1126 = vlaneseq
        %v1127 = vshrl.u32 %v1126, 7
        %v1128 = vsub.s32 1, %v1127
        %v1129 = vrot.slane %v1114, %v1128
        %v1130 = vlaneseq
        %v1131 = vshrl.u32 %v1130, 7
        %v1132 = vsub.s32 1, %v1131
        %v1133 = vrot.slane %v1118, %v1132
        %v1134 = vmul.f32 %v1059, %v1125
        %v1135 = vmul.f32 %v1060, %v1129
        %v1136 = vmul.f32 %v1061, %v1133
        %v1137 = vadd.f32 %v1134, %v1135
        %v1138 = vadd.f32 %v1137, %v1136
        %1139 = vadd.xlane.f32.xlu0 %v1138
        %v1140 = vpop.xlane.xlu0 %1139
        %v1141 = vadd.f32 %v1106, %v1140
        %v1142 = vlaneseq
        %v1143 = vshrl.u32 %v1142, 7
        %v1144 = vsub.s32 2, %v1143
        %v1145 = vrot.slane %v1068, %v1144
        %v1146 = vlaneseq
        %v1147 = vshrl.u32 %v1146, 7
        %v1148 = vsub.s32 6, %v1147
        %v1149 = vrot.slane %v1068, %v1148
        %v1150 = vlaneseq
        %v1151 = vshrl.u32 %v1150, 7
        %v1152 = vsub.s32 2, %v1151
        %v1153 = vrot.slane %v1069, %v1152
        %v1157 = vlaneseq
        %v1158 = vshrl.u32 %v1157, 7
        %v1159 = vsub.s32 2, %v1158
        %v1160 = vrot.slane %v1145, %v1159
        %v1161 = vlaneseq
        %v1162 = vshrl.u32 %v1161, 7
        %v1163 = vsub.s32 2, %v1162
        %v1164 = vrot.slane %v1149, %v1163
        %v1165 = vlaneseq
        %v1166 = vshrl.u32 %v1165, 7
        %v1167 = vsub.s32 2, %v1166
        %v1168 = vrot.slane %v1153, %v1167
        %v1169 = vmul.f32 %v1062, %v1160
        %v1170 = vmul.f32 %v1063, %v1164
        %v1171 = vmul.f32 %v1064, %v1168
        %v1172 = vadd.f32 %v1169, %v1170
        %v1173 = vadd.f32 %v1172, %v1171
        %1174 = vadd.xlane.f32.xlu0 %v1173
        %v1175 = vpop.xlane.xlu0 %1174
        %v1176 = vadd.f32 %v1141, %v1175
        %v1177 = vlaneseq
        %v1178 = vshrl.u32 %v1177, 7
        %v1179 = vsub.s32 3, %v1178
        %v1180 = vrot.slane %v1068, %v1179
        %v1181 = vlaneseq
        %v1182 = vshrl.u32 %v1181, 7
        %v1183 = vsub.s32 7, %v1182
        %v1184 = vrot.slane %v1068, %v1183
        %v1185 = vlaneseq
        %v1186 = vshrl.u32 %v1185, 7
        %v1187 = vsub.s32 3, %v1186
        %v1188 = vrot.slane %v1069, %v1187
        %v1192 = vlaneseq
        %v1193 = vshrl.u32 %v1192, 7
        %v1194 = vsub.s32 3, %v1193
        %v1195 = vrot.slane %v1180, %v1194
        %v1196 = vlaneseq
        %v1197 = vshrl.u32 %v1196, 7
        %v1198 = vsub.s32 3, %v1197
        %v1199 = vrot.slane %v1184, %v1198
        %v1200 = vlaneseq
        %v1201 = vshrl.u32 %v1200, 7
        %v1202 = vsub.s32 3, %v1201
        %v1203 = vrot.slane %v1188, %v1202
        %v1204 = vmul.f32 %v1065, %v1195
        %v1205 = vmul.f32 %v1066, %v1199
        %v1206 = vmul.f32 %v1067, %v1203
        %v1207 = vadd.f32 %v1204, %v1205
        %v1208 = vadd.f32 %v1207, %v1206
        %1209 = vadd.xlane.f32.xlu0 %v1208
        %v1210 = vpop.xlane.xlu0 %1209
        %v1211 = vadd.f32 %v1176, %v1210
        %v1212 = vmul.f32 %v1211, 0.0009765625
        %v1213 = vsub.f32 %v1056, %v1212
        %v1214 = vsub.f32 %v1057, %v1212
        %v1215 = vsub.f32 %v1058, %v1212
        %v1216 = vmul.f32 %v1213, %v1090
        %v1217 = vmul.f32 %v1214, %v1094
        %v1218 = vmul.f32 %v1215, %v1098
        %v1219 = vmul.f32 %v1216, %v1216
        %v1220 = vmul.f32 %v1217, %v1217
        %v1221 = vmul.f32 %v1218, %v1218
        %v1222 = vadd.f32 %v1219, %v1220
        %v1223 = vadd.f32 %v1222, %v1221
        %1224 = vadd.xlane.f32.xlu0 %v1223
        %v1225 = vpop.xlane.xlu0 %1224
        %v1226 = vadd.f32 %v1225, 0.0
        %v1227 = vsub.f32 %v1059, %v1212
        %v1228 = vsub.f32 %v1060, %v1212
        %v1229 = vsub.f32 %v1061, %v1212
        %v1230 = vmul.f32 %v1227, %v1125
        %v1231 = vmul.f32 %v1228, %v1129
        %v1232 = vmul.f32 %v1229, %v1133
        %v1233 = vmul.f32 %v1230, %v1230
        %v1234 = vmul.f32 %v1231, %v1231
        %v1235 = vmul.f32 %v1232, %v1232
        %v1236 = vadd.f32 %v1233, %v1234
        %v1237 = vadd.f32 %v1236, %v1235
        %1238 = vadd.xlane.f32.xlu0 %v1237
        %v1239 = vpop.xlane.xlu0 %1238
        %v1240 = vadd.f32 %v1226, %v1239
        %v1241 = vsub.f32 %v1062, %v1212
        %v1242 = vsub.f32 %v1063, %v1212
        %v1243 = vsub.f32 %v1064, %v1212
        %v1244 = vmul.f32 %v1241, %v1160
        %v1245 = vmul.f32 %v1242, %v1164
        %v1246 = vmul.f32 %v1243, %v1168
        %v1247 = vmul.f32 %v1244, %v1244
        %v1248 = vmul.f32 %v1245, %v1245
        %v1249 = vmul.f32 %v1246, %v1246
        %v1250 = vadd.f32 %v1247, %v1248
        %v1251 = vadd.f32 %v1250, %v1249
        %1252 = vadd.xlane.f32.xlu0 %v1251
        %v1253 = vpop.xlane.xlu0 %1252
        %v1254 = vadd.f32 %v1240, %v1253
        %v1255 = vsub.f32 %v1065, %v1212
        %v1256 = vsub.f32 %v1066, %v1212
        %v1257 = vsub.f32 %v1067, %v1212
        %v1258 = vmul.f32 %v1255, %v1195
        %v1259 = vmul.f32 %v1256, %v1199
        %v1260 = vmul.f32 %v1257, %v1203
        %v1261 = vmul.f32 %v1258, %v1258
        %v1262 = vmul.f32 %v1259, %v1259
        %v1263 = vmul.f32 %v1260, %v1260
        %v1264 = vadd.f32 %v1261, %v1262
        %v1265 = vadd.f32 %v1264, %v1263
        %1266 = vadd.xlane.f32.xlu0 %v1265
        %v1267 = vpop.xlane.xlu0 %1266
        %v1268 = vadd.f32 %v1254, %v1267
        %v1269 = vmul.f32 %v1268, 0.0009765625
        %v1270 = vld [vmem:[%s2] sm:$0xff]
        %v1271 = vadd.f32 %v1269, 1e-05
        %v1272 = vrsqrt.pop %v1271
        %v1273 = vmul.f32 %v1270, %v1272
        %v1274 = vmul.f32 %v1212, %v1273
        %1276 = vrot.lane.b32.xlu0 %v1274, 1
        %v1277 = vpop.permute.xlu0 %1276
        %v1279 = vsub.f32 %v1270, %v1277
        %1281 = vset.pattern.permute.xlu0 0
        %1282 = vperm.xlu0 %1281, %v1273
        %v1283 = vpop.permute.xlu0 %1282
        %v1285 = vmul.f32 %v1056, %v1283
        %v1286 = vmul.f32 %v1057, %v1283
        %v1287 = vmul.f32 %v1058, %v1283
        %1289 = vset.pattern.permute.xlu0 1
        %1290 = vperm.xlu0 %1289, %v1279
        %v1291 = vpop.permute.xlu0 %1290
        %v1293 = vadd.f32 %v1285, %v1291
        %v1294 = vadd.f32 %v1286, %v1291
        %v1295 = vadd.f32 %v1287, %v1291
        %v1296 = vmax.f32 %v1293, 0.0
        %v1297 = vmax.f32 %v1294, 0.0
        %v1298 = vmax.f32 %v1295, 0.0
        %1299 = vst [vmem:[%s190] sm:$0xff] %v1296
        %1300 = vst [vmem:[%s190 + $0x8] sm:$0xff] %v1297
        %1301 = vst [vmem:[%s190 + $0x10] sm:$0xff] %v1298
        %v1302 = vmul.f32 %v1059, %v1283
        %v1303 = vmul.f32 %v1060, %v1283
        %v1304 = vmul.f32 %v1061, %v1283
        %v1305 = vadd.f32 %v1302, %v1291
        %v1306 = vadd.f32 %v1303, %v1291
        %v1307 = vadd.f32 %v1304, %v1291
        %v1308 = vmax.f32 %v1305, 0.0
        %v1309 = vmax.f32 %v1306, 0.0
        %v1310 = vmax.f32 %v1307, 0.0
        %1311 = vst [vmem:[%s190 + $0x18] sm:$0xff] %v1308
        %1312 = vst [vmem:[%s190 + $0x20] sm:$0xff] %v1309
        %1313 = vst [vmem:[%s190 + $0x28] sm:$0xff] %v1310
        %v1314 = vmul.f32 %v1062, %v1283
        %v1315 = vmul.f32 %v1063, %v1283
        %v1316 = vmul.f32 %v1064, %v1283
        %v1317 = vadd.f32 %v1314, %v1291
        %v1318 = vadd.f32 %v1315, %v1291
        %v1319 = vadd.f32 %v1316, %v1291
        %v1320 = vmax.f32 %v1317, 0.0
        %v1321 = vmax.f32 %v1318, 0.0
        %v1322 = vmax.f32 %v1319, 0.0
        %1323 = vst [vmem:[%s190 + $0x30] sm:$0xff] %v1320
        %1324 = vst [vmem:[%s190 + $0x38] sm:$0xff] %v1321
        %1325 = vst [vmem:[%s190 + $0x40] sm:$0xff] %v1322
        %v1326 = vmul.f32 %v1065, %v1283
        %v1327 = vmul.f32 %v1066, %v1283
        %v1328 = vmul.f32 %v1067, %v1283
        %v1329 = vadd.f32 %v1326, %v1291
        %v1330 = vadd.f32 %v1327, %v1291
        %v1331 = vadd.f32 %v1328, %v1291
        %v1332 = vmax.f32 %v1329, 0.0
        %v1333 = vmax.f32 %v1330, 0.0
        %v1334 = vmax.f32 %v1331, 0.0
        %1335 = vst [vmem:[%s190 + $0x48] sm:$0xff] %v1332
        %1336 = vst [vmem:[%s190 + $0x50] sm:$0xff] %v1333
        %1337 = vst [vmem:[%s190 + $0x58] sm:$0xff] %v1334
        %s1338 = sand.u32 %s115, 1
        %s1339 = scalar_lea.sflag [#allocation3], %s1338
        %s1340 = sand.u32 %s115, 1
        %s1341 = smul.addr %s1340, 96
        %s1342 = scalar_lea.vmem [#allocation2], %s1341
        // Predicated region
        $region37: #{tpu_custom_call.1} parent=35 // pred_check
          %p1343 = pneg %p125
        $region38: #{tpu_custom_call.1} parent=35 // pred_check_branch
          %1345 = sbr.rel (%p1343) target = $region40
        $region39: #{tpu_custom_call.1} parent=35 // pred_region
          %s1347 = ssub.s32 1536, 1536
          %1348 = vsyncadd %s1339, %s1347
          %s1349 = smul.addr %s18, 12
          %s1350 = smul.addr %s1349, 128
          %s1351 = scalar_lea.hbm %s4, %s1350
          %s1352 = sshll.u32 %s1342, 4
          %s1353 = int_to_ptr.vmem [resolvable:$true] %s1352
          %1358 = dma.vmem_to_hbm [thread:$0]  %s1353, 1536, %s1351, %s1339, 384, 384, 24
        $region40: #{tpu_custom_call.1} parent=35 // pred_fallthru
          _
      $region36: #{tpu_custom_call.1} parent=5 // pred_fallthru
        _
      %p1359 = scmp.le.s32.totalorder 2, %s13
      // Predicated region
      $region41: #{tpu_custom_call.1} parent=5 // pred_check
        %p1360 = pneg %p1359
      $region42: #{tpu_custom_call.1} parent=5 // pred_check_branch
        %1362 = sbr.rel (%p1360) target = $region44
      $region43: #{tpu_custom_call.1} parent=5 // pred_region
        %s1363 = ssub.s32 %s13, 2
        // Predicated region
        $region45: #{tpu_custom_call.1} parent=43 // pred_check
          %p1364 = pneg %p131
        $region46: #{tpu_custom_call.1} parent=43 // pred_check_branch
          %1366 = sbr.rel (%p1364) target = $region48
        $region47: #{tpu_custom_call.1} parent=43 // pred_region
          %s1367 = sand.u32 %s116, 1
          %s1368 = scalar_lea.sflag [#allocation3], %s1367
          %s1369 = sand.u32 %s116, 1
          %s1370 = smul.addr %s1369, 96
          %s1371 = scalar_lea.vmem [#allocation2], %s1370
          %1372 = dma.done %s1368, 1536
        $region48: #{tpu_custom_call.1} parent=43 // pred_fallthru
          _
      $region44: #{tpu_custom_call.1} parent=5 // pred_fallthru
        _
    $region6: #{tpu_custom_call.1} parent=1 // loop_footer
      %s17 = sadd.s32 1, %s13
    $region7: #{tpu_custom_call.1} parent=1 // loop_footer_branch
      %12 = sbr.rel target = $region3
    $region8: #{tpu_custom_call.1} parent=1 // loop_exit
      _
    %1373 = vsyncpa [#allocation3], 1
    %s1374 = scalar_lea.sflag [#allocation3], 1
    %1375 = vsyncpa %s1374, 1

</llo_original>
